<compile_context>
chip_gen: v5e
topology: v5e:2x2
jax: 0.10.0
libtpu: 0.0.40
codegen_flags: <defaults>
</compile_context>

<pallas_src>
import jax
import jax.numpy as jnp
import numpy as np
from jax import lax
from jax.experimental import pallas as pl
from jax.experimental.pallas import tpu as pltpu

EPS = 1e-5


def davenet_kernel(bn_ref,            # SMEM (2,): [bn_scale, bn_shift]
                   x_ref,             # (Bb, T, F)        f32
                   w1_ref, b1_ref,    # (3F, 64) bf16,    (1, 64)  f32
                   w2_ref, b2_ref,    # (192, 256) bf16,  (1, 256) f32
                   w3_ref, b3_ref,    # (3, 256, 512) bf16, (1, 512) f32
                   out_ref,           # (Bb, T+4, 512)    f32
                   x1_ref,            # (Bb*(T+2), 3F)    f32  conv1 im2col
                   x2_ref,            # (Bb*(T+2), 192)   f32  conv2 im2col
                   h2_ref):           # (Bb*(T+6), 256)   f32  conv2 out, padded slots
    Bb, T, F = x_ref.shape
    T1 = T + 2            # conv1 / conv2 output length
    T3 = T + 4            # conv3 output length
    S = T + 6             # conv3 input slot length (T1 + 2*pad)
    M3 = Bb * S - 2       # stacked conv3 matmul M-dim

    scale = bn_ref[0]
    shift = bn_ref[1]

    # Zero only the halo rows (cheap) each step; interiors are fully
    # overwritten below.  Doing it every step (instead of once at program 0)
    # stays correct if the parallel batch axis is split across TensorCores.
    zx1 = jnp.zeros((2, 3 * F), jnp.float32)
    zx2 = jnp.zeros((1, 192), jnp.float32)
    zh2 = jnp.zeros((2, 256), jnp.float32)
    for b in range(Bb):
        r1 = b * T1
        x1_ref[r1:r1 + 2, :] = zx1
        x1_ref[r1 + T:r1 + T + 2, :] = zx1
        x2_ref[r1:r1 + 1, :] = zx2
        x2_ref[r1 + T1 - 1:r1 + T1, :] = zx2
        r3 = b * S
        h2_ref[r3:r3 + 2, :] = zh2
        h2_ref[r3 + T1 + 2:r3 + S, :] = zh2

    # ---- BatchNorm2d(1) (inference affine) + im2col for conv1 ----
    # Output row t, tap k reads xn[t + k - 2]  (padding=(0,2)).
    for b in range(Bb):
        xn = x_ref[b] * scale + shift                 # (T, F) f32
        r1 = b * T1
        x1_ref[r1 + 2:r1 + 2 + T, 0:F] = xn           # tap k = 0
        x1_ref[r1 + 1:r1 + 1 + T, F:2 * F] = xn       # tap k = 1
        x1_ref[r1:r1 + T, 2 * F:3 * F] = xn           # tap k = 2

    # ---- conv1: single (Bb*T1, 3F) @ (3F, 64) bf16 matmul, f32 accumulate ----
    h1 = jnp.dot(x1_ref[...].astype(jnp.bfloat16), w1_ref[...],
                 preferred_element_type=jnp.float32)
    h1 = jnp.maximum(h1 + b1_ref[...], 0.0)           # (Bb*T1, 64) f32

    # ---- im2col for conv2 (padding 1): three shifted 64-wide column blocks ----
    for b in range(Bb):
        hb = h1[b * T1:(b + 1) * T1]                  # (T1, 64)
        r1 = b * T1
        x2_ref[r1 + 1:r1 + T1, 0:64] = hb[0:T1 - 1]   # tap k = 0
        x2_ref[r1:r1 + T1, 64:128] = hb               # tap k = 1
        x2_ref[r1:r1 + T1 - 1, 128:192] = hb[1:T1]    # tap k = 2

    # ---- conv2: single (Bb*T1, 192) @ (192, 256) bf16 matmul ----
    h2 = jnp.dot(x2_ref[...].astype(jnp.bfloat16), w2_ref[...],
                 preferred_element_type=jnp.float32)
    h2 = jnp.maximum(h2 + b2_ref[...], 0.0)           # (Bb*T1, 256) f32

    # ---- stash conv2 output into per-batch zero-padded slots (padding = 2) ----
    for b in range(Bb):
        h2_ref[b * S + 2:b * S + 2 + T1, :] = h2[b * T1:(b + 1) * T1]

    # ---- conv3: K=256 already fills the MXU -> 3 tap matmuls over the whole
    # stacked buffer; value-chain f32 accumulation (MRB-friendly on v7x). ----
    h2b = h2_ref[...].astype(jnp.bfloat16)            # (Bb*S, 256)
    acc = jnp.zeros((M3, 512), jnp.float32)
    for k in range(3):
        acc = acc + jnp.dot(h2b[k:k + M3, :], w3_ref[k],
                            preferred_element_type=jnp.float32)

    for b in range(Bb):
        out_ref[b] = jnp.maximum(acc[b * S:b * S + T3] + b3_ref[...], 0.0)


def davenet_small_pallas(x, params, block_batch=None):
    """x: (B, input_dim, T) float32 -> (B, 512, T + 4) float32."""
    B, F, T = x.shape
    T1, T3, S = T + 2, T + 4, T + 6

    # Pack batch elements per grid step (amortize grid overhead / fill MXU M),
    # but cap the resident rows so scratch + blocks stay well inside VMEM.
    if block_batch is None:
        block_batch = max(1, min(B, 1024 // S))
    Bb = block_batch
    while B % Bb:
        Bb -= 1

    xt = jnp.transpose(x, (0, 2, 1)).astype(jnp.float32)                # (B, T, F)

    # Fold conv weights into per-tap matmul matrices; K-concat conv1/conv2. bf16.
    w1 = jnp.transpose(params["W1"][:, 0, :, :], (2, 1, 0)) \
            .reshape(3 * F, 64).astype(jnp.bfloat16)                    # (3F, 64)
    w2 = jnp.transpose(params["W2"][:, :, 0, :], (2, 1, 0)) \
            .reshape(192, 256).astype(jnp.bfloat16)                     # (192, 256)
    w3 = jnp.transpose(params["W3"][:, :, 0, :], (2, 1, 0)) \
            .astype(jnp.bfloat16)                                       # (3, 256, 512)
    b1 = params["B1"][None, :].astype(jnp.float32)                      # (1, 64)
    b2 = params["B2"][None, :].astype(jnp.float32)                      # (1, 256)
    b3 = params["B3"][None, :].astype(jnp.float32)                      # (1, 512)

    # Fold BN running stats into a scale/shift pair (applied before zero-pad).
    bn_scale = params["bn_gamma"] * lax.rsqrt(params["bn_var"] + EPS)
    bn_shift = params["bn_beta"] - params["bn_mean"] * bn_scale
    bn = jnp.stack([bn_scale, bn_shift]).astype(jnp.float32)            # (2,)

    flops = 2 * B * (T1 * 3 * F * 64 + T1 * 192 * 256 + S * 3 * 256 * 512)
    bytes_accessed = (B * T * F * 4
                      + (3 * F * 64 + 192 * 256 + 3 * 256 * 512) * 2
                      + (64 + 256 + 512) * 4 + 8
                      + B * T3 * 512 * 4)

    out = pl.pallas_call(
        davenet_kernel,
        out_shape=jax.ShapeDtypeStruct((B, T3, 512), jnp.float32),
        grid=(B // Bb,),
        in_specs=[
            pl.BlockSpec(memory_space=pltpu.MemorySpace.SMEM),          # bn scale/shift
            pl.BlockSpec((Bb, T, F), lambda g: (g, 0, 0)),
            pl.BlockSpec((3 * F, 64), lambda g: (0, 0)),
            pl.BlockSpec((1, 64), lambda g: (0, 0)),
            pl.BlockSpec((192, 256), lambda g: (0, 0)),
            pl.BlockSpec((1, 256), lambda g: (0, 0)),
            pl.BlockSpec((3, 256, 512), lambda g: (0, 0, 0)),
            pl.BlockSpec((1, 512), lambda g: (0, 0)),
        ],
        out_specs=pl.BlockSpec((Bb, T3, 512), lambda g: (g, 0, 0)),
        scratch_shapes=[
            pltpu.VMEM((Bb * T1, 3 * F), jnp.float32),    # conv1 im2col
            pltpu.VMEM((Bb * T1, 192), jnp.float32),      # conv2 im2col
            pltpu.VMEM((Bb * S, 256), jnp.float32),       # conv2 out, padded slots
        ],
        compiler_params=pltpu.CompilerParams(
            dimension_semantics=("parallel",),
            vmem_limit_bytes=64 * 1024 * 1024),
        cost_estimate=pl.CostEstimate(flops=flops, transcendentals=0,
                                      bytes_accessed=bytes_accessed),
    )(bn, xt, w1, b1, w2, b2, w3, b3)

    return jnp.transpose(out, (0, 2, 1))                 # (B, 512, T+4), PyTorch layout


def init_params(key, input_dim):
    """Deterministic params mirroring nn.Conv2d / nn.BatchNorm2d shapes."""
    k1, k2, k3 = jax.random.split(key, 3)

    def conv_init(k, shape):
        fan_in = shape[1] * shape[2] * shape[3]
        bound = 1.0 / np.sqrt(fan_in)
        kw, kb = jax.random.split(k)
        w = jax.random.uniform(kw, shape, jnp.float32, -bound, bound)
        b = jax.random.uniform(kb, (shape[0],), jnp.float32, -bound, bound)
        return w, b

    W1, B1 = conv_init(k1, (64, 1, input_dim, 3))
    W2, B2 = conv_init(k2, (256, 64, 1, 3))
    W3, B3 = conv_init(k3, (512, 256, 1, 3))
    return dict(
        W1=W1, B1=B1, W2=W2, B2=B2, W3=W3, B3=B3,
        bn_gamma=jnp.float32(1.2), bn_beta=jnp.float32(0.1),
        bn_mean=jnp.float32(0.05), bn_var=jnp.float32(0.9),
    )


def reference_forward(x, params):
    """Pure-JAX reference matching the PyTorch forward (NCHW convs)."""
    x4 = x[:, None, :, :]                                               # (B,1,F,T)
    xb = ((x4 - params["bn_mean"]) * lax.rsqrt(params["bn_var"] + EPS)
          * params["bn_gamma"] + params["bn_beta"])
    dn = ("NCHW", "OIHW", "NCHW")
    h = lax.conv_general_dilated(xb, params["W1"], (1, 1),
                                 [(0, 0), (2, 2)], dimension_numbers=dn)
    h = jax.nn.relu(h + params["B1"][None, :, None, None])
    h = lax.conv_general_dilated(h, params["W2"], (1, 1),
                                 [(0, 0), (1, 1)], dimension_numbers=dn)
    h = jax.nn.relu(h + params["B2"][None, :, None, None])
    h = lax.conv_general_dilated(h, params["W3"], (1, 1),
                                 [(0, 0), (2, 2)], dimension_numbers=dn)
    h = jax.nn.relu(h + params["B3"][None, :, None, None])
    return h[:, :, 0, :]                                                # (B,512,T+4)


if __name__ == "__main__":
    B, INPUT_DIM, T = 2, 8, 16
    key = jax.random.PRNGKey(0)
    kx, kp = jax.random.split(key)
    x = jax.random.normal(kx, (B, INPUT_DIM, T), jnp.float32)
    params = init_params(kp, INPUT_DIM)

    out = davenet_small_pallas(x, params)
    out = jax.block_until_ready(out)
    assert out.shape == (B, 512, T + 4), out.shape

    ref = jax.block_until_ready(reference_forward(x, params))
    # bf16 MXU operands with f32 accumulation: keep a slightly looser tolerance.
    np.testing.assert_allclose(np.asarray(out), np.asarray(ref),
                               rtol=2e-2, atol=2e-2)
    print("KERNEL_OK")
</pallas_src>

<mosaic_0001>
module attributes {stable_mosaic.version = 11 : i64} {
  func.func @davenet_kernel(%arg0: i32, %arg1: memref<2xf32, #tpu.memory_space<smem>>, %arg2: memref<2x16x8xf32, #tpu.memory_space<vmem>>, %arg3: memref<24x64xbf16, #tpu.memory_space<vmem>>, %arg4: memref<1x64xf32, #tpu.memory_space<vmem>>, %arg5: memref<192x256xbf16, #tpu.memory_space<vmem>>, %arg6: memref<1x256xf32, #tpu.memory_space<vmem>>, %arg7: memref<3x256x512xbf16, #tpu.memory_space<vmem>>, %arg8: memref<1x512xf32, #tpu.memory_space<vmem>>, %arg9: memref<2x20x512xf32, #tpu.memory_space<vmem>>, %arg10: memref<36x24xf32, #tpu.memory_space<vmem>>, %arg11: memref<36x192xf32, #tpu.memory_space<vmem>>, %arg12: memref<44x256xf32, #tpu.memory_space<vmem>>) attributes {dimension_semantics = [#tpu.dimension_semantics<parallel>], iteration_bounds = array<i64: 1>, scalar_prefetch = 0 : i64, scratch_operands = 3 : i64, tpu.core_type = #tpu.core_type<tc>, window_params = [{transform_indices = @transform_0, window_bounds = array<i64: 2>}, {transform_indices = @transform_1, window_bounds = array<i64: 2, 16, 8>}, {pipeline_mode = #tpu.pipeline_mode<synchronous>, transform_indices = @transform_2, window_bounds = array<i64: 24, 64>}, {pipeline_mode = #tpu.pipeline_mode<synchronous>, transform_indices = @transform_3, window_bounds = array<i64: 1, 64>}, {pipeline_mode = #tpu.pipeline_mode<synchronous>, transform_indices = @transform_4, window_bounds = array<i64: 192, 256>}, {pipeline_mode = #tpu.pipeline_mode<synchronous>, transform_indices = @transform_5, window_bounds = array<i64: 1, 256>}, {pipeline_mode = #tpu.pipeline_mode<synchronous>, transform_indices = @transform_6, window_bounds = array<i64: 3, 256, 512>}, {pipeline_mode = #tpu.pipeline_mode<synchronous>, transform_indices = @transform_7, window_bounds = array<i64: 1, 512>}, {transform_indices = @transform_8, window_bounds = array<i64: 2, 20, 512>}]} {
    %c0 = arith.constant 0 : index
    %0 = memref.load %arg1[%c0] : memref<2xf32, #tpu.memory_space<smem>>
    %c1 = arith.constant 1 : index
    %1 = memref.load %arg1[%c1] : memref<2xf32, #tpu.memory_space<smem>>
    %cst = arith.constant 0.000000e+00 : f32
    %2 = vector.broadcast %cst : f32 to vector<2x24xf32>
    %cst_0 = arith.constant 0.000000e+00 : f32
    %3 = vector.broadcast %cst_0 : f32 to vector<1x192xf32>
    %cst_1 = arith.constant 0.000000e+00 : f32
    %4 = vector.broadcast %cst_1 : f32 to vector<2x256xf32>
    %c0_2 = arith.constant 0 : index
    %c0_3 = arith.constant 0 : index
    %5 = vector.load %arg10[%c0_2, %c0_3] : memref<36x24xf32, #tpu.memory_space<vmem>>, vector<2x24xf32>
    tpu.vector_store %arg10[%c0_2, %c0_3], %2 {strides = array<i32>} : memref<36x24xf32, #tpu.memory_space<vmem>>, vector<2x24xf32>,
    %c16 = arith.constant 16 : index
    %c0_4 = arith.constant 0 : index
    %6 = vector.load %arg10[%c16, %c0_4] : memref<36x24xf32, #tpu.memory_space<vmem>>, vector<2x24xf32>
    tpu.vector_store %arg10[%c16, %c0_4], %2 {strides = array<i32>} : memref<36x24xf32, #tpu.memory_space<vmem>>, vector<2x24xf32>,
    %c0_5 = arith.constant 0 : index
    %c0_6 = arith.constant 0 : index
    %7 = vector.load %arg11[%c0_5, %c0_6] : memref<36x192xf32, #tpu.memory_space<vmem>>, vector<1x192xf32>
    tpu.vector_store %arg11[%c0_5, %c0_6], %3 {strides = array<i32>} : memref<36x192xf32, #tpu.memory_space<vmem>>, vector<1x192xf32>,
    %c17 = arith.constant 17 : index
    %c0_7 = arith.constant 0 : index
    %8 = vector.load %arg11[%c17, %c0_7] : memref<36x192xf32, #tpu.memory_space<vmem>>, vector<1x192xf32>
    tpu.vector_store %arg11[%c17, %c0_7], %3 {strides = array<i32>} : memref<36x192xf32, #tpu.memory_space<vmem>>, vector<1x192xf32>,
    %c0_8 = arith.constant 0 : index
    %c0_9 = arith.constant 0 : index
    %9 = vector.load %arg12[%c0_8, %c0_9] : memref<44x256xf32, #tpu.memory_space<vmem>>, vector<2x256xf32>
    tpu.vector_store %arg12[%c0_8, %c0_9], %4 {strides = array<i32>} : memref<44x256xf32, #tpu.memory_space<vmem>>, vector<2x256xf32>,
    %c20 = arith.constant 20 : index
    %c0_10 = arith.constant 0 : index
    %10 = vector.load %arg12[%c20, %c0_10] : memref<44x256xf32, #tpu.memory_space<vmem>>, vector<2x256xf32>
    tpu.vector_store %arg12[%c20, %c0_10], %4 {strides = array<i32>} : memref<44x256xf32, #tpu.memory_space<vmem>>, vector<2x256xf32>,
    %c18 = arith.constant 18 : index
    %c0_11 = arith.constant 0 : index
    %11 = vector.load %arg10[%c18, %c0_11] : memref<36x24xf32, #tpu.memory_space<vmem>>, vector<2x24xf32>
    tpu.vector_store %arg10[%c18, %c0_11], %2 {strides = array<i32>} : memref<36x24xf32, #tpu.memory_space<vmem>>, vector<2x24xf32>,
    %c34 = arith.constant 34 : index
    %c0_12 = arith.constant 0 : index
    %12 = vector.load %arg10[%c34, %c0_12] : memref<36x24xf32, #tpu.memory_space<vmem>>, vector<2x24xf32>
    tpu.vector_store %arg10[%c34, %c0_12], %2 {strides = array<i32>} : memref<36x24xf32, #tpu.memory_space<vmem>>, vector<2x24xf32>,
    %c18_13 = arith.constant 18 : index
    %c0_14 = arith.constant 0 : index
    %13 = vector.load %arg11[%c18_13, %c0_14] : memref<36x192xf32, #tpu.memory_space<vmem>>, vector<1x192xf32>
    tpu.vector_store %arg11[%c18_13, %c0_14], %3 {strides = array<i32>} : memref<36x192xf32, #tpu.memory_space<vmem>>, vector<1x192xf32>,
    %c35 = arith.constant 35 : index
    %c0_15 = arith.constant 0 : index
    %14 = vector.load %arg11[%c35, %c0_15] : memref<36x192xf32, #tpu.memory_space<vmem>>, vector<1x192xf32>
    tpu.vector_store %arg11[%c35, %c0_15], %3 {strides = array<i32>} : memref<36x192xf32, #tpu.memory_space<vmem>>, vector<1x192xf32>,
    %c22 = arith.constant 22 : index
    %c0_16 = arith.constant 0 : index
    %15 = vector.load %arg12[%c22, %c0_16] : memref<44x256xf32, #tpu.memory_space<vmem>>, vector<2x256xf32>
    tpu.vector_store %arg12[%c22, %c0_16], %4 {strides = array<i32>} : memref<44x256xf32, #tpu.memory_space<vmem>>, vector<2x256xf32>,
    %c42 = arith.constant 42 : index
    %c0_17 = arith.constant 0 : index
    %16 = vector.load %arg12[%c42, %c0_17] : memref<44x256xf32, #tpu.memory_space<vmem>>, vector<2x256xf32>
    tpu.vector_store %arg12[%c42, %c0_17], %4 {strides = array<i32>} : memref<44x256xf32, #tpu.memory_space<vmem>>, vector<2x256xf32>,
    %c0_18 = arith.constant 0 : index
    %c0_19 = arith.constant 0 : index
    %c0_20 = arith.constant 0 : index
    %17 = vector.load %arg2[%c0_18, %c0_19, %c0_20] : memref<2x16x8xf32, #tpu.memory_space<vmem>>, vector<1x16x8xf32>
    %18 = vector.shape_cast %17 : vector<1x16x8xf32> to vector<16x8xf32>
    %19 = vector.broadcast %0 : f32 to vector<16x8xf32>
    %20 = arith.mulf %18, %19 : vector<16x8xf32>
    %21 = vector.broadcast %1 : f32 to vector<16x8xf32>
    %22 = arith.addf %20, %21 : vector<16x8xf32>
    %c2 = arith.constant 2 : index
    %c0_21 = arith.constant 0 : index
    %23 = vector.load %arg10[%c2, %c0_21] : memref<36x24xf32, #tpu.memory_space<vmem>>, vector<16x8xf32>
    tpu.vector_store %arg10[%c2, %c0_21], %22 {strides = array<i32>} : memref<36x24xf32, #tpu.memory_space<vmem>>, vector<16x8xf32>,
    %c1_22 = arith.constant 1 : index
    %c8 = arith.constant 8 : index
    %24 = vector.load %arg10[%c1_22, %c8] : memref<36x24xf32, #tpu.memory_space<vmem>>, vector<16x8xf32>
    tpu.vector_store %arg10[%c1_22, %c8], %22 {strides = array<i32>} : memref<36x24xf32, #tpu.memory_space<vmem>>, vector<16x8xf32>,
    %c0_23 = arith.constant 0 : index
    %c16_24 = arith.constant 16 : index
    %25 = vector.load %arg10[%c0_23, %c16_24] : memref<36x24xf32, #tpu.memory_space<vmem>>, vector<16x8xf32>
    tpu.vector_store %arg10[%c0_23, %c16_24], %22 {strides = array<i32>} : memref<36x24xf32, #tpu.memory_space<vmem>>, vector<16x8xf32>,
    %c1_25 = arith.constant 1 : index
    %c0_26 = arith.constant 0 : index
    %c0_27 = arith.constant 0 : index
    %26 = vector.load %arg2[%c1_25, %c0_26, %c0_27] : memref<2x16x8xf32, #tpu.memory_space<vmem>>, vector<1x16x8xf32>
    %27 = vector.shape_cast %26 : vector<1x16x8xf32> to vector<16x8xf32>
    %28 = vector.broadcast %0 : f32 to vector<16x8xf32>
    %29 = arith.mulf %27, %28 : vector<16x8xf32>
    %30 = vector.broadcast %1 : f32 to vector<16x8xf32>
    %31 = arith.addf %29, %30 : vector<16x8xf32>
    %c20_28 = arith.constant 20 : index
    %c0_29 = arith.constant 0 : index
    %32 = vector.load %arg10[%c20_28, %c0_29] : memref<36x24xf32, #tpu.memory_space<vmem>>, vector<16x8xf32>
    tpu.vector_store %arg10[%c20_28, %c0_29], %31 {strides = array<i32>} : memref<36x24xf32, #tpu.memory_space<vmem>>, vector<16x8xf32>,
    %c19 = arith.constant 19 : index
    %c8_30 = arith.constant 8 : index
    %33 = vector.load %arg10[%c19, %c8_30] : memref<36x24xf32, #tpu.memory_space<vmem>>, vector<16x8xf32>
    tpu.vector_store %arg10[%c19, %c8_30], %31 {strides = array<i32>} : memref<36x24xf32, #tpu.memory_space<vmem>>, vector<16x8xf32>,
    %c18_31 = arith.constant 18 : index
    %c16_32 = arith.constant 16 : index
    %34 = vector.load %arg10[%c18_31, %c16_32] : memref<36x24xf32, #tpu.memory_space<vmem>>, vector<16x8xf32>
    tpu.vector_store %arg10[%c18_31, %c16_32], %31 {strides = array<i32>} : memref<36x24xf32, #tpu.memory_space<vmem>>, vector<16x8xf32>,
    %c0_33 = arith.constant 0 : index
    %c0_34 = arith.constant 0 : index
    %35 = vector.load %arg10[%c0_33, %c0_34] : memref<36x24xf32, #tpu.memory_space<vmem>>, vector<36x24xf32>
    %36 = arith.truncf %35 : vector<36x24xf32> to vector<36x24xbf16>
    %c0_35 = arith.constant 0 : index
    %c0_36 = arith.constant 0 : index
    %37 = vector.load %arg3[%c0_35, %c0_36] : memref<24x64xbf16, #tpu.memory_space<vmem>>, vector<24x64xbf16>
    %cst_37 = arith.constant dense<0.000000e+00> : vector<36x64xf32>
    %38 = tpu.matmul %36, %37, %cst_37 {dimension_numbers = #tpu.dot_dimension_numbers<[1], [0], [0], [1], [0, 0, 1, 1], [], []>} : vector<36x24xbf16>, vector<24x64xbf16>, vector<36x64xf32> -> vector<36x64xf32>
    %c0_38 = arith.constant 0 : index
    %c0_39 = arith.constant 0 : index
    %39 = vector.load %arg4[%c0_38, %c0_39] : memref<1x64xf32, #tpu.memory_space<vmem>>, vector<1x64xf32>
    %40 = vector.broadcast %39 : vector<1x64xf32> to vector<36x64xf32>
    %41 = arith.addf %38, %40 : vector<36x64xf32>
    %cst_40 = arith.constant 0.000000e+00 : f32
    %42 = vector.broadcast %cst_40 : f32 to vector<36x64xf32>
    %43 = arith.maximumf %41, %42 : vector<36x64xf32>
    %44 = vector.extract_strided_slice %43 {offsets = [0, 0], sizes = [18, 64], strides = [1, 1]} : vector<36x64xf32> to vector<18x64xf32>
    %45 = vector.extract_strided_slice %44 {offsets = [0, 0], sizes = [17, 64], strides = [1, 1]} : vector<18x64xf32> to vector<17x64xf32>
    %c1_41 = arith.constant 1 : index
    %c0_42 = arith.constant 0 : index
    %46 = vector.load %arg11[%c1_41, %c0_42] : memref<36x192xf32, #tpu.memory_space<vmem>>, vector<17x64xf32>
    tpu.vector_store %arg11[%c1_41, %c0_42], %45 {strides = array<i32>} : memref<36x192xf32, #tpu.memory_space<vmem>>, vector<17x64xf32>,
    %c0_43 = arith.constant 0 : index
    %c64 = arith.constant 64 : index
    %47 = vector.load %arg11[%c0_43, %c64] : memref<36x192xf32, #tpu.memory_space<vmem>>, vector<18x64xf32>
    tpu.vector_store %arg11[%c0_43, %c64], %44 {strides = array<i32>} : memref<36x192xf32, #tpu.memory_space<vmem>>, vector<18x64xf32>,
    %48 = vector.extract_strided_slice %44 {offsets = [1, 0], sizes = [17, 64], strides = [1, 1]} : vector<18x64xf32> to vector<17x64xf32>
    %c0_44 = arith.constant 0 : index
    %c128 = arith.constant 128 : index
    %49 = vector.load %arg11[%c0_44, %c128] : memref<36x192xf32, #tpu.memory_space<vmem>>, vector<17x64xf32>
    tpu.vector_store %arg11[%c0_44, %c128], %48 {strides = array<i32>} : memref<36x192xf32, #tpu.memory_space<vmem>>, vector<17x64xf32>,
    %50 = vector.extract_strided_slice %43 {offsets = [18, 0], sizes = [18, 64], strides = [1, 1]} : vector<36x64xf32> to vector<18x64xf32>
    %51 = vector.extract_strided_slice %50 {offsets = [0, 0], sizes = [17, 64], strides = [1, 1]} : vector<18x64xf32> to vector<17x64xf32>
    %c19_45 = arith.constant 19 : index
    %c0_46 = arith.constant 0 : index
    %52 = vector.load %arg11[%c19_45, %c0_46] : memref<36x192xf32, #tpu.memory_space<vmem>>, vector<17x64xf32>
    tpu.vector_store %arg11[%c19_45, %c0_46], %51 {strides = array<i32>} : memref<36x192xf32, #tpu.memory_space<vmem>>, vector<17x64xf32>,
    %c18_47 = arith.constant 18 : index
    %c64_48 = arith.constant 64 : index
    %53 = vector.load %arg11[%c18_47, %c64_48] : memref<36x192xf32, #tpu.memory_space<vmem>>, vector<18x64xf32>
    tpu.vector_store %arg11[%c18_47, %c64_48], %50 {strides = array<i32>} : memref<36x192xf32, #tpu.memory_space<vmem>>, vector<18x64xf32>,
    %54 = vector.extract_strided_slice %50 {offsets = [1, 0], sizes = [17, 64], strides = [1, 1]} : vector<18x64xf32> to vector<17x64xf32>
    %c18_49 = arith.constant 18 : index
    %c128_50 = arith.constant 128 : index
    %55 = vector.load %arg11[%c18_49, %c128_50] : memref<36x192xf32, #tpu.memory_space<vmem>>, vector<17x64xf32>
    tpu.vector_store %arg11[%c18_49, %c128_50], %54 {strides = array<i32>} : memref<36x192xf32, #tpu.memory_space<vmem>>, vector<17x64xf32>,
    %c0_51 = arith.constant 0 : index
    %c0_52 = arith.constant 0 : index
    %56 = vector.load %arg11[%c0_51, %c0_52] : memref<36x192xf32, #tpu.memory_space<vmem>>, vector<36x192xf32>
    %57 = arith.truncf %56 : vector<36x192xf32> to vector<36x192xbf16>
    %c0_53 = arith.constant 0 : index
    %c0_54 = arith.constant 0 : index
    %58 = vector.load %arg5[%c0_53, %c0_54] : memref<192x256xbf16, #tpu.memory_space<vmem>>, vector<192x256xbf16>
    %cst_55 = arith.constant dense<0.000000e+00> : vector<36x256xf32>
    %59 = tpu.matmul %57, %58, %cst_55 {dimension_numbers = #tpu.dot_dimension_numbers<[1], [0], [0], [1], [0, 0, 1, 1], [], []>} : vector<36x192xbf16>, vector<192x256xbf16>, vector<36x256xf32> -> vector<36x256xf32>
    %c0_56 = arith.constant 0 : index
    %c0_57 = arith.constant 0 : index
    %60 = vector.load %arg6[%c0_56, %c0_57] : memref<1x256xf32, #tpu.memory_space<vmem>>, vector<1x256xf32>
    %61 = vector.broadcast %60 : vector<1x256xf32> to vector<36x256xf32>
    %62 = arith.addf %59, %61 : vector<36x256xf32>
    %cst_58 = arith.constant 0.000000e+00 : f32
    %63 = vector.broadcast %cst_58 : f32 to vector<36x256xf32>
    %64 = arith.maximumf %62, %63 : vector<36x256xf32>
    %65 = vector.extract_strided_slice %64 {offsets = [0, 0], sizes = [18, 256], strides = [1, 1]} : vector<36x256xf32> to vector<18x256xf32>
    %c2_59 = arith.constant 2 : index
    %c0_60 = arith.constant 0 : index
    %66 = vector.load %arg12[%c2_59, %c0_60] : memref<44x256xf32, #tpu.memory_space<vmem>>, vector<18x256xf32>
    tpu.vector_store %arg12[%c2_59, %c0_60], %65 {strides = array<i32>} : memref<44x256xf32, #tpu.memory_space<vmem>>, vector<18x256xf32>,
    %67 = vector.extract_strided_slice %64 {offsets = [18, 0], sizes = [18, 256], strides = [1, 1]} : vector<36x256xf32> to vector<18x256xf32>
    %c24 = arith.constant 24 : index
    %c0_61 = arith.constant 0 : index
    %68 = vector.load %arg12[%c24, %c0_61] : memref<44x256xf32, #tpu.memory_space<vmem>>, vector<18x256xf32>
    tpu.vector_store %arg12[%c24, %c0_61], %67 {strides = array<i32>} : memref<44x256xf32, #tpu.memory_space<vmem>>, vector<18x256xf32>,
    %c0_62 = arith.constant 0 : index
    %c0_63 = arith.constant 0 : index
    %69 = vector.load %arg12[%c0_62, %c0_63] : memref<44x256xf32, #tpu.memory_space<vmem>>, vector<44x256xf32>
    %70 = arith.truncf %69 : vector<44x256xf32> to vector<44x256xbf16>
    %cst_64 = arith.constant 0.000000e+00 : f32
    %71 = vector.broadcast %cst_64 : f32 to vector<42x512xf32>
    %72 = vector.extract_strided_slice %70 {offsets = [0, 0], sizes = [42, 256], strides = [1, 1]} : vector<44x256xbf16> to vector<42x256xbf16>
    %c0_65 = arith.constant 0 : index
    %c0_66 = arith.constant 0 : index
    %c0_67 = arith.constant 0 : index
    %73 = vector.load %arg7[%c0_65, %c0_66, %c0_67] : memref<3x256x512xbf16, #tpu.memory_space<vmem>>, vector<1x256x512xbf16>
    %74 = vector.shape_cast %73 : vector<1x256x512xbf16> to vector<256x512xbf16>
    %cst_68 = arith.constant dense<0.000000e+00> : vector<42x512xf32>
    %75 = tpu.matmul %72, %74, %cst_68 {dimension_numbers = #tpu.dot_dimension_numbers<[1], [0], [0], [1], [0, 0, 1, 1], [], []>} : vector<42x256xbf16>, vector<256x512xbf16>, vector<42x512xf32> -> vector<42x512xf32>
    %76 = arith.addf %71, %75 : vector<42x512xf32>
    %77 = vector.extract_strided_slice %70 {offsets = [1, 0], sizes = [42, 256], strides = [1, 1]} : vector<44x256xbf16> to vector<42x256xbf16>
    %c1_69 = arith.constant 1 : index
    %c0_70 = arith.constant 0 : index
    %c0_71 = arith.constant 0 : index
    %78 = vector.load %arg7[%c1_69, %c0_70, %c0_71] : memref<3x256x512xbf16, #tpu.memory_space<vmem>>, vector<1x256x512xbf16>
    %79 = vector.shape_cast %78 : vector<1x256x512xbf16> to vector<256x512xbf16>
    %cst_72 = arith.constant dense<0.000000e+00> : vector<42x512xf32>
    %80 = tpu.matmul %77, %79, %cst_72 {dimension_numbers = #tpu.dot_dimension_numbers<[1], [0], [0], [1], [0, 0, 1, 1], [], []>} : vector<42x256xbf16>, vector<256x512xbf16>, vector<42x512xf32> -> vector<42x512xf32>
    %81 = arith.addf %76, %80 : vector<42x512xf32>
    %82 = vector.extract_strided_slice %70 {offsets = [2, 0], sizes = [42, 256], strides = [1, 1]} : vector<44x256xbf16> to vector<42x256xbf16>
    %c2_73 = arith.constant 2 : index
    %c0_74 = arith.constant 0 : index
    %c0_75 = arith.constant 0 : index
    %83 = vector.load %arg7[%c2_73, %c0_74, %c0_75] : memref<3x256x512xbf16, #tpu.memory_space<vmem>>, vector<1x256x512xbf16>
    %84 = vector.shape_cast %83 : vector<1x256x512xbf16> to vector<256x512xbf16>
    %cst_76 = arith.constant dense<0.000000e+00> : vector<42x512xf32>
    %85 = tpu.matmul %82, %84, %cst_76 {dimension_numbers = #tpu.dot_dimension_numbers<[1], [0], [0], [1], [0, 0, 1, 1], [], []>} : vector<42x256xbf16>, vector<256x512xbf16>, vector<42x512xf32> -> vector<42x512xf32>
    %86 = arith.addf %81, %85 : vector<42x512xf32>
    %87 = vector.extract_strided_slice %86 {offsets = [0, 0], sizes = [20, 512], strides = [1, 1]} : vector<42x512xf32> to vector<20x512xf32>
    %c0_77 = arith.constant 0 : index
    %c0_78 = arith.constant 0 : index
    %88 = vector.load %arg8[%c0_77, %c0_78] : memref<1x512xf32, #tpu.memory_space<vmem>>, vector<1x512xf32>
    %89 = vector.broadcast %88 : vector<1x512xf32> to vector<20x512xf32>
    %90 = arith.addf %87, %89 : vector<20x512xf32>
    %cst_79 = arith.constant 0.000000e+00 : f32
    %91 = vector.broadcast %cst_79 : f32 to vector<20x512xf32>
    %92 = arith.maximumf %90, %91 : vector<20x512xf32>
    %c0_80 = arith.constant 0 : index
    %c0_81 = arith.constant 0 : index
    %c0_82 = arith.constant 0 : index
    %93 = vector.load %arg9[%c0_80, %c0_81, %c0_82] : memref<2x20x512xf32, #tpu.memory_space<vmem>>, vector<1x20x512xf32>
    %94 = vector.shape_cast %93 : vector<1x20x512xf32> to vector<20x512xf32>
    %95 = vector.shape_cast %92 : vector<20x512xf32> to vector<1x20x512xf32>
    tpu.vector_store %arg9[%c0_80, %c0_81, %c0_82], %95 {strides = array<i32>} : memref<2x20x512xf32, #tpu.memory_space<vmem>>, vector<1x20x512xf32>,
    %96 = vector.extract_strided_slice %86 {offsets = [22, 0], sizes = [20, 512], strides = [1, 1]} : vector<42x512xf32> to vector<20x512xf32>
    %c0_83 = arith.constant 0 : index
    %c0_84 = arith.constant 0 : index
    %97 = vector.load %arg8[%c0_83, %c0_84] : memref<1x512xf32, #tpu.memory_space<vmem>>, vector<1x512xf32>
    %98 = vector.broadcast %97 : vector<1x512xf32> to vector<20x512xf32>
    %99 = arith.addf %96, %98 : vector<20x512xf32>
    %cst_85 = arith.constant 0.000000e+00 : f32
    %100 = vector.broadcast %cst_85 : f32 to vector<20x512xf32>
    %101 = arith.maximumf %99, %100 : vector<20x512xf32>
    %c1_86 = arith.constant 1 : index
    %c0_87 = arith.constant 0 : index
    %c0_88 = arith.constant 0 : index
    %102 = vector.load %arg9[%c1_86, %c0_87, %c0_88] : memref<2x20x512xf32, #tpu.memory_space<vmem>>, vector<1x20x512xf32>
    %103 = vector.shape_cast %102 : vector<1x20x512xf32> to vector<20x512xf32>
    %104 = vector.shape_cast %101 : vector<20x512xf32> to vector<1x20x512xf32>
    tpu.vector_store %arg9[%c1_86, %c0_87, %c0_88], %104 {strides = array<i32>} : memref<2x20x512xf32, #tpu.memory_space<vmem>>, vector<1x20x512xf32>,
    return
  }
  func.func @transform_0(%arg0: i32) -> i32 {
    %c0_i32 = arith.constant 0 : i32
    %c0_i32_0 = arith.constant 0 : i32
    return %c0_i32 : i32
  }
  func.func @transform_1(%arg0: i32) -> (i32, i32, i32) {
    %c0_i32 = arith.constant 0 : i32
    %c0_i32_0 = arith.constant 0 : i32
    %c0_i32_1 = arith.constant 0 : i32
    return %arg0, %c0_i32, %c0_i32_0 : i32, i32, i32
  }
  func.func @transform_2(%arg0: i32) -> (i32, i32) {
    %c0_i32 = arith.constant 0 : i32
    %c0_i32_0 = arith.constant 0 : i32
    %c0_i32_1 = arith.constant 0 : i32
    return %c0_i32, %c0_i32_0 : i32, i32
  }
  func.func @transform_3(%arg0: i32) -> (i32, i32) {
    %c0_i32 = arith.constant 0 : i32
    %c0_i32_0 = arith.constant 0 : i32
    %c0_i32_1 = arith.constant 0 : i32
    return %c0_i32, %c0_i32_0 : i32, i32
  }
  func.func @transform_4(%arg0: i32) -> (i32, i32) {
    %c0_i32 = arith.constant 0 : i32
    %c0_i32_0 = arith.constant 0 : i32
    %c0_i32_1 = arith.constant 0 : i32
    return %c0_i32, %c0_i32_0 : i32, i32
  }
  func.func @transform_5(%arg0: i32) -> (i32, i32) {
    %c0_i32 = arith.constant 0 : i32
    %c0_i32_0 = arith.constant 0 : i32
    %c0_i32_1 = arith.constant 0 : i32
    return %c0_i32, %c0_i32_0 : i32, i32
  }
  func.func @transform_6(%arg0: i32) -> (i32, i32, i32) {
    %c0_i32 = arith.constant 0 : i32
    %c0_i32_0 = arith.constant 0 : i32
    %c0_i32_1 = arith.constant 0 : i32
    %c0_i32_2 = arith.constant 0 : i32
    return %c0_i32, %c0_i32_0, %c0_i32_1 : i32, i32, i32
  }
  func.func @transform_7(%arg0: i32) -> (i32, i32) {
    %c0_i32 = arith.constant 0 : i32
    %c0_i32_0 = arith.constant 0 : i32
    %c0_i32_1 = arith.constant 0 : i32
    return %c0_i32, %c0_i32_0 : i32, i32
  }
  func.func @transform_8(%arg0: i32) -> (i32, i32, i32) {
    %c0_i32 = arith.constant 0 : i32
    %c0_i32_0 = arith.constant 0 : i32
    %c0_i32_1 = arith.constant 0 : i32
    return %arg0, %c0_i32, %c0_i32_0 : i32, i32, i32
  }
}

</mosaic_0001>

<llo_original>
// kernel: tpu_custom_call.1
$region0: #{tpu_custom_call.1}
  #allocation0 [shape = 'u32[]', space=smem, size = 0x4, offset = 0x4, fixed_abs, tag = 'smem constant byte address 0x4 - core index']
  #allocation1 [shape = 'u32[72,128]{1,0:T(1,128)}', space=vmem, size = 0x9000, scoped, tag = 'internal scratch']
  #allocation2 [shape = 'f32[36,24]{1,0:T(8,128)}', space=vmem, size = 0x5000, scoped, tag = 'scratch operand']
  #allocation3 [shape = 'f32[36,192]{1,0:T(8,128)}', space=vmem, size = 0xa000, scoped, tag = 'scratch operand']
  #allocation4 [shape = 'f32[44,256]{1,0:T(8,128)}', space=vmem, size = 0xc000, scoped, tag = 'scratch operand']
  %s0 = inlined_call_operand.vmem [shape: f32[2], index: 0, kind: input, shape index: {}]
  %s1 = inlined_call_operand.vmem [shape: f32[2,16,8], index: 1, kind: input, shape index: {}]
  %s2 = inlined_call_operand.vmem [shape: bf16[24,64], index: 2, kind: input, shape index: {}]
  %s3 = inlined_call_operand.vmem [shape: f32[1,64], index: 3, kind: input, shape index: {}]
  %s4 = inlined_call_operand.hbm [shape: bf16[192,256], index: 4, kind: input, shape index: {}]
  %s5 = inlined_call_operand.vmem [shape: f32[1,256], index: 5, kind: input, shape index: {}]
  %s6 = inlined_call_operand.hbm [shape: bf16[3,256,512], index: 6, kind: input, shape index: {}]
  %s7 = inlined_call_operand.vmem [shape: f32[1,512], index: 7, kind: input, shape index: {}]
  %s8 = inlined_call_operand.vmem [shape: f32[2,20,512], index: 8, kind: output, shape index: {}]
  %s9 = sld [smem:[#allocation0]]
  $region54: #{tpu_custom_call.1} parent=0
    _
  %s11 = ssub.s32 1, %s9
  %s12 = scalar_select 0, %s11, %s9
  $region1: #{tpu_custom_call.1} parent=0
    #allocation5 [shape = 'u8[512]{0}', space=smem, size = 0x200, scoped, tag = 'input window, operand 0, single buffered']
    #allocation6 [shape = 's32[1]{0}', space=sflag, size = 0x4, scoped, tag = 'scoped memory for tpu_custom_call.1']
    #allocation7 [shape = 's32[1]{0}', space=sflag, size = 0x4, scoped, tag = 'scoped memory for tpu_custom_call.1']
    #allocation8 [shape = 'u8[98304]{0}', space=vmem, size = 0x18000, scoped, tag = 'input window, operand 4, single buffered']
    #allocation9 [shape = 'u8[786432]{0}', space=vmem, size = 0xc0000, scoped, tag = 'input window, operand 6, single buffered']
    #allocation10 [shape = 's32[1]{0}', space=sflag, size = 0x4, scoped, tag = 'scoped memory for tpu_custom_call.1']
    %13 = vsyncpa [#allocation7], 0
    %14 = vsyncpa [#allocation6], 0
    %15 = vsyncpa [#allocation10], 0
    // Predicated region
    $region2: #{tpu_custom_call.1} parent=1 // pred_check
      _
    $region3: #{tpu_custom_call.1} parent=1 // pred_check_branch
      %17 = sbr.rel (0) target = $region5
    $region4: #{tpu_custom_call.1} parent=1 // pred_region
      %19 = vsyncadd [#allocation7], 0
      %s21 = sshll.u32 %s0, 4
      %s22 = int_to_ptr.vmem [resolvable:$true] %s21
      %24 = dma.vmem_to_smem %s22, 16, [#allocation5], [#allocation7]
    $region5: #{tpu_custom_call.1} parent=1 // pred_fallthru
      _
    // Predicated region
    $region6: #{tpu_custom_call.1} parent=1 // pred_check
      _
    $region7: #{tpu_custom_call.1} parent=1 // pred_check_branch
      %26 = sbr.rel (0) target = $region9
    $region8: #{tpu_custom_call.1} parent=1 // pred_region
      _
    $region9: #{tpu_custom_call.1} parent=1 // pred_fallthru
      _
    // Predicated region
    $region10: #{tpu_custom_call.1} parent=1 // pred_check
      _
    $region11: #{tpu_custom_call.1} parent=1 // pred_check_branch
      %28 = sbr.rel (0) target = $region13
    $region12: #{tpu_custom_call.1} parent=1 // pred_region
      _
    $region13: #{tpu_custom_call.1} parent=1 // pred_fallthru
      _
    // Predicated region
    $region14: #{tpu_custom_call.1} parent=1 // pred_check
      _
    $region15: #{tpu_custom_call.1} parent=1 // pred_check_branch
      %30 = sbr.rel (0) target = $region17
    $region16: #{tpu_custom_call.1} parent=1 // pred_region
      _
    $region17: #{tpu_custom_call.1} parent=1 // pred_fallthru
      _
    // Predicated region
    $region18: #{tpu_custom_call.1} parent=1 // pred_check
      _
    $region19: #{tpu_custom_call.1} parent=1 // pred_check_branch
      %32 = sbr.rel (0) target = $region21
    $region20: #{tpu_custom_call.1} parent=1 // pred_region
      %34 = vsyncadd [#allocation6], 0
      %s35 = sshll.u32 %s4, 4
      %s36 = int_to_ptr.hbm [resolvable:$true] %s35
      %s37 = sshll.u32 [#allocation8], 4
      %s38 = int_to_ptr.vmem [resolvable:$true] %s37
      %43 = dma.hbm_to_vmem [thread:$0]  %s36, 3072, %s38, [#allocation6], 128, 128, 8
    $region21: #{tpu_custom_call.1} parent=1 // pred_fallthru
      _
    // Predicated region
    $region22: #{tpu_custom_call.1} parent=1 // pred_check
      _
    $region23: #{tpu_custom_call.1} parent=1 // pred_check_branch
      %45 = sbr.rel (0) target = $region25
    $region24: #{tpu_custom_call.1} parent=1 // pred_region
      _
    $region25: #{tpu_custom_call.1} parent=1 // pred_fallthru
      _
    // Predicated region
    $region26: #{tpu_custom_call.1} parent=1 // pred_check
      _
    $region27: #{tpu_custom_call.1} parent=1 // pred_check_branch
      %47 = sbr.rel (0) target = $region29
    $region28: #{tpu_custom_call.1} parent=1 // pred_region
      %49 = vsyncadd [#allocation10], 0
      %s50 = sshll.u32 %s6, 4
      %s51 = int_to_ptr.hbm [resolvable:$true] %s50
      %s52 = sshll.u32 [#allocation9], 4
      %s53 = int_to_ptr.vmem [resolvable:$true] %s52
      %58 = dma.hbm_to_vmem [thread:$0]  %s51, 24576, %s53, [#allocation10], 256, 256, 16
    $region29: #{tpu_custom_call.1} parent=1 // pred_fallthru
      _
    // Predicated region
    $region30: #{tpu_custom_call.1} parent=1 // pred_check
      _
    $region31: #{tpu_custom_call.1} parent=1 // pred_check_branch
      %60 = sbr.rel (0) target = $region33
    $region32: #{tpu_custom_call.1} parent=1 // pred_region
      _
    $region33: #{tpu_custom_call.1} parent=1 // pred_fallthru
      _
    // Predicated region
    $region34: #{tpu_custom_call.1} parent=1 // pred_check
      _
    $region35: #{tpu_custom_call.1} parent=1 // pred_check_branch
      %62 = sbr.rel (0) target = $region37
    $region36: #{tpu_custom_call.1} parent=1 // pred_region
      %64 = dma.done [#allocation7], 16
    $region37: #{tpu_custom_call.1} parent=1 // pred_fallthru
      _
    // Predicated region
    $region38: #{tpu_custom_call.1} parent=1 // pred_check
      _
    $region39: #{tpu_custom_call.1} parent=1 // pred_check_branch
      %66 = sbr.rel (0) target = $region41
    $region40: #{tpu_custom_call.1} parent=1 // pred_region
      %68 = dma.done [#allocation6], 3072
    $region41: #{tpu_custom_call.1} parent=1 // pred_fallthru
      _
    // Predicated region
    $region42: #{tpu_custom_call.1} parent=1 // pred_check
      _
    $region43: #{tpu_custom_call.1} parent=1 // pred_check_branch
      %70 = sbr.rel (0) target = $region45
    $region44: #{tpu_custom_call.1} parent=1 // pred_region
      %72 = dma.done [#allocation10], 24576
    $region45: #{tpu_custom_call.1} parent=1 // pred_fallthru
      _
    %73 = sfence
    %s75 = sld [smem:[#allocation5]]
    %s76 = sld [smem:[#allocation5 + $0x1]]
    %vm77 = vcmask 189440
    %78 = vst.msk [vmem:[#allocation2] sm:$0x3] %vm77, 0.0
    %79 = vst.msk [vmem:[#allocation2 + $0x10] sm:$0x3] %vm77, 0.0
    %v80 = vlaneseq
    %vm81 = vcmp.ge.s32.totalorder %v80, 0
    %vm82 = vcmp.lt.s32.totalorder %v80, 192
    %vm83 = vmand %vm81, %vm82
    %84 = vst.msk [vmem:[#allocation3] ss:$8 sm:$0x3] %vm83, 0.0
    %85 = vst.msk [vmem:[#allocation3] ss:$8 sm:$0x0] %vm83, 0.0
    %s86 = scalar_lea.vmem [#allocation3], 33
    %87 = vst.msk [vmem:[%s86] ss:$8 sm:$0x3] %vm83, 0.0
    %88 = vst.msk [vmem:[%s86] ss:$8 sm:$0x0] %vm83, 0.0
    %89 = vst [vmem:[#allocation4] sm:$0x3] 0.0
    %90 = vst [vmem:[#allocation4 + $0x8] sm:$0x3] 0.0
    %91 = vst [vmem:[#allocation4 + $0x20] sm:$0x30] 0.0
    %92 = vst [vmem:[#allocation4 + $0x28] sm:$0x30] 0.0
    %93 = vst.msk [vmem:[#allocation2 + $0x12] sm:$0x3] %vm77, 0.0
    %94 = vst.msk [vmem:[#allocation2 + $0x22] sm:$0x3] %vm77, 0.0
    %s95 = scalar_lea.vmem [#allocation3], 34
    %96 = vst.msk [vmem:[%s95] ss:$8 sm:$0x3] %vm83, 0.0
    %97 = vst.msk [vmem:[%s95] ss:$8 sm:$0x0] %vm83, 0.0
    %s98 = scalar_lea.vmem [#allocation3], 67
    %99 = vst.msk [vmem:[%s98] ss:$8 sm:$0x3] %vm83, 0.0
    %100 = vst.msk [vmem:[%s98] ss:$8 sm:$0x0] %vm83, 0.0
    %101 = vst [vmem:[#allocation4 + $0x20] sm:$0xc0] 0.0
    %102 = vst [vmem:[#allocation4 + $0x28] sm:$0xc0] 0.0
    %103 = vst [vmem:[#allocation4 + $0x50] sm:$0xc] 0.0
    %104 = vst [vmem:[#allocation4 + $0x58] sm:$0xc] 0.0
    %v105 = vld [vmem:[%s1] sm:$0xff]
    %v106 = vld [vmem:[%s1 + $0x8] sm:$0xff]
    %v107 = vstv %s75
    %v108 = vmul.f32 %v105, %v107
    %v109 = vmul.f32 %v106, %v107
    %v110 = vstv %s76
    %v111 = vadd.f32 %v108, %v110
    %v112 = vadd.f32 %v109, %v110
    %vm113 = vcmask 64512
    %114 = vst.msk [vmem:[#allocation2 + $0x2] sm:$0xff] %vm113, %v111
    %115 = vst.msk [vmem:[#allocation2 + $0xa] sm:$0xff] %vm113, %v112
    %118 = vrot.lane.b32.xlu0 %v111, 8
    %v119 = vpop.permute.xlu0 %118
    %120 = vrot.lane.b32.xlu0 %v112, 8
    %v121 = vpop.permute.xlu0 %120
    %vm124 = vcmask 130112
    %125 = vst.msk [vmem:[#allocation2 + $0x1] sm:$0xff] %vm124, %v119
    %126 = vst.msk [vmem:[#allocation2 + $0x9] sm:$0xff] %vm124, %v121
    %127 = vrot.lane.b32.xlu0 %v111, 16
    %v128 = vpop.permute.xlu0 %127
    %129 = vrot.lane.b32.xlu0 %v112, 16
    %v130 = vpop.permute.xlu0 %129
    %vm133 = vcmask 195712
    %134 = vst.msk [vmem:[#allocation2] sm:$0xff] %vm133, %v128
    %135 = vst.msk [vmem:[#allocation2 + $0x8] sm:$0xff] %vm133, %v130
    %s136 = scalar_lea.vmem %s1, 16
    %v137 = vld [vmem:[%s136] sm:$0xff]
    %v138 = vld [vmem:[%s136 + $0x8] sm:$0xff]
    %v139 = vmul.f32 %v137, %v107
    %v140 = vmul.f32 %v138, %v107
    %v141 = vadd.f32 %v139, %v110
    %v142 = vadd.f32 %v140, %v110
    %143 = vst.msk [vmem:[#allocation2 + $0x14] sm:$0xff] %vm113, %v141
    %144 = vst.msk [vmem:[#allocation2 + $0x1c] sm:$0xff] %vm113, %v142
    %147 = vrot.lane.b32.xlu0 %v141, 8
    %v148 = vpop.permute.xlu0 %147
    %149 = vrot.lane.b32.xlu0 %v142, 8
    %v150 = vpop.permute.xlu0 %149
    %153 = vst.msk [vmem:[#allocation2 + $0x13] sm:$0xff] %vm124, %v148
    %154 = vst.msk [vmem:[#allocation2 + $0x1b] sm:$0xff] %vm124, %v150
    %155 = vrot.lane.b32.xlu0 %v141, 16
    %v156 = vpop.permute.xlu0 %155
    %157 = vrot.lane.b32.xlu0 %v142, 16
    %v158 = vpop.permute.xlu0 %157
    %161 = vst.msk [vmem:[#allocation2 + $0x12] sm:$0xff] %vm133, %v156
    %162 = vst.msk [vmem:[#allocation2 + $0x1a] sm:$0xff] %vm133, %v158
    %v163 = vld [vmem:[#allocation2] sm:$0xff]
    %v164 = vld [vmem:[#allocation2 + $0x8] sm:$0xff]
    %v165 = vld [vmem:[#allocation2 + $0x10] sm:$0xff]
    %v166 = vld [vmem:[#allocation2 + $0x18] sm:$0xff]
    %v167 = vld [vmem:[#allocation2 + $0x20] sm:$0xf]
    %v168 = vpack.c.bf16 %v164, %v163
    %v169 = vpack.c.bf16 %v166, %v165
    %v170 = vpack.c.bf16 %v167, %v167
    %v171 = vld [vmem:[%s2] sm:$0xf]
    %v172 = vld [vmem:[%s2 + $0x4] sm:$0xf]
    %v173 = vld [vmem:[%s2 + $0x8] sm:$0xf]
    %v174 = vld [vmem:[%s3] sm:$0x1]
    %v176 = vperm.slane %v174, 0
    %v181 = vunpack.c.l.b16 %v171
    %v182 = vunpack.c.l.b16 %v172
    %v183 = vunpack.c.l.b16 %v173
    %v184 = vpack.c.b16 %v182, %v181
    %v185 = vpack.c.b16 %v183, %v183
    %vm187 = vcmask 195584
    %v189 = vsel %vm187, %v168, 0
    %v192 = vsel %vm187, %v169, 0
    %v195 = vsel %vm187, %v170, 0
    %vm197 = vcmask 1043456
    %v199 = vsel %vm197, %v185, 0
    %201 = vmatpush.bf16.msra.mxu0 0
    %202 = vmatpush.bf16.msra.mxu0 0
    %203 = vmatpush.bf16.msra.mxu0 0
    %204 = vmatpush.bf16.msra.mxu0 0
    %205 = vmatpush.bf16.msra.mxu0 0
    %206 = vmatpush.bf16.msra.mxu0 0
    %207 = vmatpush.bf16.msra.mxu0 %v199
    %208 = vmatpush.bf16.msra.mxu0 %v184
    %209 = vmatmul.bf16.gmra.mxu0 %v189
    %v210 = vpop.f32.mrf.mxu0
    %v211 = vadd.f32 %v176, %v210
    %v212 = vpop.f32.mrf.mxu0
    %v213 = vadd.f32 %v176, %v212
    %214 = vmatmul.bf16.gmra.mxu0 %v192
    %v215 = vpop.f32.mrf.mxu0
    %v216 = vadd.f32 %v176, %v215
    %v217 = vpop.f32.mrf.mxu0
    %v218 = vadd.f32 %v176, %v217
    %219 = vmatmul.bf16.gmra.mxu0 %v195
    %v220 = vpop.f32.mrf.mxu0
    %v221 = vadd.f32 %v176, %v220
    %v222 = vpop.f32.mrf.mxu0
    %223 = vdwg.mxu0
    %v224 = vmax.f32 %v211, 0.0
    %v225 = vmax.f32 %v213, 0.0
    %v226 = vmax.f32 %v216, 0.0
    %v227 = vmax.f32 %v218, 0.0
    %v228 = vmax.f32 %v221, 0.0
    %vm232 = vcmask 1040384
    %v233 = vrot.slane %v224, 7
    %v234 = vrot.slane %v225, 7
    %v235 = vsel %vm232, %v233, %v234
    %v236 = vrot.slane %v226, 7
    %v237 = vsel %vm232, %v234, %v236
    %vm241 = vcmask 523265
    %242 = vst.msk [vmem:[#allocation3] sm:$0xfe] %vm241, %v233
    %vm243 = vcmask 523264
    %244 = vst.msk [vmem:[#allocation3 + $0x10] sm:$0xff] %vm243, %v235
    %vm245 = vcmask 517120
    %246 = vst.msk [vmem:[#allocation3 + $0x20] sm:$0x3] %vm245, %v237
    %247 = vrot.lane.b32.xlu0 %v224, 64
    %v248 = vpop.permute.xlu0 %247
    %249 = vrot.lane.b32.xlu0 %v225, 64
    %v250 = vpop.permute.xlu0 %249
    %251 = vrot.lane.b32.xlu0 %v226, 64
    %v252 = vpop.permute.xlu0 %251
    %vm256 = vcmask 1048064
    %257 = vst.msk [vmem:[#allocation3] sm:$0xff] %vm256, %v248
    %258 = vst.msk [vmem:[#allocation3 + $0x10] sm:$0xff] %vm256, %v250
    %vm259 = vcmask 1041920
    %260 = vst.msk [vmem:[#allocation3 + $0x20] sm:$0x3] %vm259, %v252
    %vm261 = vcmask 1046528
    %v262 = vrot.slane %v224, 1
    %v263 = vrot.slane %v225, 1
    %v264 = vsel %vm261, %v262, %v263
    %v265 = vrot.slane %v226, 1
    %v266 = vsel %vm261, %v263, %v265
    %270 = vst.msk [vmem:[#allocation3 + $0x8] sm:$0xff] %vm243, %v264
    %271 = vst.msk [vmem:[#allocation3 + $0x18] sm:$0xff] %vm243, %v266
    %vm272 = vcmask 516096
    %273 = vst.msk [vmem:[#allocation3 + $0x28] sm:$0x1] %vm272, %v265
    %v276 = vrot.slane %v227, 7
    %v277 = vsel %vm232, %v236, %v276
    %v278 = vrot.slane %v228, 7
    %v279 = vsel %vm232, %v276, %v278
    %vm283 = vcmask 523267
    %284 = vst.msk [vmem:[#allocation3 + $0x20] sm:$0xf8] %vm283, %v236
    %285 = vst.msk [vmem:[#allocation3 + $0x30] sm:$0xff] %vm243, %v277
    %vm286 = vcmask 519168
    %287 = vst.msk [vmem:[#allocation3 + $0x40] sm:$0xf] %vm286, %v279
    %288 = vrot.lane.b32.xlu0 %v227, 64
    %v289 = vpop.permute.xlu0 %288
    %290 = vrot.lane.b32.xlu0 %v228, 64
    %v291 = vpop.permute.xlu0 %290
    %vm294 = vcmask 1048066
    %295 = vst.msk [vmem:[#allocation3 + $0x20] sm:$0xfc] %vm294, %v252
    %296 = vst.msk [vmem:[#allocation3 + $0x30] sm:$0xff] %vm256, %v289
    %vm297 = vcmask 1043968
    %298 = vst.msk [vmem:[#allocation3 + $0x40] sm:$0xf] %vm297, %v291
    %v299 = vrot.slane %v227, 1
    %v300 = vsel %vm261, %v265, %v299
    %v301 = vrot.slane %v228, 1
    %v302 = vsel %vm261, %v299, %v301
    %vm306 = vcmask 523266
    %307 = vst.msk [vmem:[#allocation3 + $0x28] sm:$0xfc] %vm306, %v300
    %308 = vst.msk [vmem:[#allocation3 + $0x38] sm:$0xff] %vm243, %v302
    %vm309 = vcmask 518144
    %310 = vst.msk [vmem:[#allocation3 + $0x48] sm:$0x7] %vm309, %v301
    %v311 = vld [vmem:[#allocation3] sm:$0xff]
    %v312 = vld [vmem:[#allocation3 + $0x8] sm:$0xff]
    %v313 = vld [vmem:[#allocation3 + $0x10] sm:$0xff]
    %v314 = vld [vmem:[#allocation3 + $0x18] sm:$0xff]
    %v315 = vld [vmem:[#allocation3 + $0x20] sm:$0xff]
    %v316 = vld [vmem:[#allocation3 + $0x28] sm:$0xff]
    %v317 = vld [vmem:[#allocation3 + $0x30] sm:$0xff]
    %v318 = vld [vmem:[#allocation3 + $0x38] sm:$0xff]
    %v319 = vld [vmem:[#allocation3 + $0x40] sm:$0xf]
    %v320 = vld [vmem:[#allocation3 + $0x48] sm:$0xf]
    %v321 = vpack.c.bf16 %v313, %v311
    %v322 = vpack.c.bf16 %v314, %v312
    %v323 = vpack.c.bf16 %v317, %v315
    %v324 = vpack.c.bf16 %v318, %v316
    %v325 = vpack.c.bf16 %v319, %v319
    %v326 = vpack.c.bf16 %v320, %v320
    %v327 = vld [vmem:[#allocation8] sm:$0xff]
    %v328 = vld [vmem:[#allocation8 + $0x8] sm:$0xff]
    %v329 = vld [vmem:[#allocation8 + $0x10] sm:$0xff]
    %v330 = vld [vmem:[#allocation8 + $0x18] sm:$0xff]
    %v331 = vld [vmem:[#allocation8 + $0x20] sm:$0xff]
    %v332 = vld [vmem:[#allocation8 + $0x28] sm:$0xff]
    %v333 = vld [vmem:[#allocation8 + $0x30] sm:$0xff]
    %v334 = vld [vmem:[#allocation8 + $0x38] sm:$0xff]
    %v335 = vld [vmem:[#allocation8 + $0x40] sm:$0xff]
    %v336 = vld [vmem:[#allocation8 + $0x48] sm:$0xff]
    %v337 = vld [vmem:[#allocation8 + $0x50] sm:$0xff]
    %v338 = vld [vmem:[#allocation8 + $0x58] sm:$0xff]
    %v339 = vld [vmem:[#allocation8 + $0x60] sm:$0xff]
    %v340 = vld [vmem:[#allocation8 + $0x68] sm:$0xff]
    %v341 = vld [vmem:[#allocation8 + $0x70] sm:$0xff]
    %v342 = vld [vmem:[#allocation8 + $0x78] sm:$0xff]
    %v343 = vld [vmem:[#allocation8 + $0x80] sm:$0xff]
    %v344 = vld [vmem:[#allocation8 + $0x88] sm:$0xff]
    %v345 = vld [vmem:[#allocation8 + $0x90] sm:$0xff]
    %v346 = vld [vmem:[#allocation8 + $0x98] sm:$0xff]
    %v347 = vld [vmem:[#allocation8 + $0xa0] sm:$0xff]
    %v348 = vld [vmem:[#allocation8 + $0xa8] sm:$0xff]
    %v349 = vld [vmem:[#allocation8 + $0xb0] sm:$0xff]
    %v350 = vld [vmem:[#allocation8 + $0xb8] sm:$0xff]
    %v351 = vld [vmem:[%s5] sm:$0x3]
    %v353 = vperm.slane %v351, 0
    %v354 = vperm.slane %v351, 1
    %v381 = vunpack.c.l.b16 %v327
    %v382 = vunpack.c.h.b16 %v327
    %v383 = vunpack.c.l.b16 %v328
    %v384 = vunpack.c.h.b16 %v328
    %v385 = vunpack.c.l.b16 %v329
    %v386 = vunpack.c.h.b16 %v329
    %v387 = vunpack.c.l.b16 %v330
    %v388 = vunpack.c.h.b16 %v330
    %v389 = vunpack.c.l.b16 %v331
    %v390 = vunpack.c.h.b16 %v331
    %v391 = vunpack.c.l.b16 %v332
    %v392 = vunpack.c.h.b16 %v332
    %v393 = vunpack.c.l.b16 %v333
    %v394 = vunpack.c.h.b16 %v333
    %v395 = vunpack.c.l.b16 %v334
    %v396 = vunpack.c.h.b16 %v334
    %v397 = vunpack.c.l.b16 %v335
    %v398 = vunpack.c.h.b16 %v335
    %v399 = vunpack.c.l.b16 %v336
    %v400 = vunpack.c.h.b16 %v336
    %v401 = vunpack.c.l.b16 %v337
    %v402 = vunpack.c.h.b16 %v337
    %v403 = vunpack.c.l.b16 %v338
    %v404 = vunpack.c.h.b16 %v338
    %v405 = vunpack.c.l.b16 %v339
    %v406 = vunpack.c.h.b16 %v339
    %v407 = vunpack.c.l.b16 %v340
    %v408 = vunpack.c.h.b16 %v340
    %v409 = vunpack.c.l.b16 %v341
    %v410 = vunpack.c.h.b16 %v341
    %v411 = vunpack.c.l.b16 %v342
    %v412 = vunpack.c.h.b16 %v342
    %v413 = vunpack.c.l.b16 %v343
    %v414 = vunpack.c.h.b16 %v343
    %v415 = vunpack.c.l.b16 %v344
    %v416 = vunpack.c.h.b16 %v344
    %v417 = vunpack.c.l.b16 %v345
    %v418 = vunpack.c.h.b16 %v345
    %v419 = vunpack.c.l.b16 %v346
    %v420 = vunpack.c.h.b16 %v346
    %v421 = vunpack.c.l.b16 %v347
    %v422 = vunpack.c.h.b16 %v347
    %v423 = vunpack.c.l.b16 %v348
    %v424 = vunpack.c.h.b16 %v348
    %v425 = vunpack.c.l.b16 %v349
    %v426 = vunpack.c.h.b16 %v349
    %v427 = vunpack.c.l.b16 %v350
    %v428 = vunpack.c.h.b16 %v350
    %v429 = vpack.c.b16 %v383, %v381
    %v430 = vpack.c.b16 %v384, %v382
    %v431 = vpack.c.b16 %v387, %v385
    %v432 = vpack.c.b16 %v388, %v386
    %v433 = vpack.c.b16 %v391, %v389
    %v434 = vpack.c.b16 %v392, %v390
    %v435 = vpack.c.b16 %v395, %v393
    %v436 = vpack.c.b16 %v396, %v394
    %v437 = vpack.c.b16 %v399, %v397
    %v438 = vpack.c.b16 %v400, %v398
    %v439 = vpack.c.b16 %v403, %v401
    %v440 = vpack.c.b16 %v404, %v402
    %v441 = vpack.c.b16 %v407, %v405
    %v442 = vpack.c.b16 %v408, %v406
    %v443 = vpack.c.b16 %v411, %v409
    %v444 = vpack.c.b16 %v412, %v410
    %v445 = vpack.c.b16 %v415, %v413
    %v446 = vpack.c.b16 %v416, %v414
    %v447 = vpack.c.b16 %v419, %v417
    %v448 = vpack.c.b16 %v420, %v418
    %v449 = vpack.c.b16 %v423, %v421
    %v450 = vpack.c.b16 %v424, %v422
    %v451 = vpack.c.b16 %v427, %v425
    %v452 = vpack.c.b16 %v428, %v426
    %v478 = vsel %vm243, %v322, 0
    %v481 = vsel %vm243, %v324, 0
    %v484 = vsel %vm243, %v326, 0
    %486 = vmatpush.bf16.msra.mxu0 %v443
    %487 = vmatpush.bf16.msra.mxu0 %v441
    %488 = vmatpush.bf16.msra.mxu0 %v439
    %489 = vmatpush.bf16.msra.mxu0 %v437
    %490 = vmatpush.bf16.msra.mxu0 %v435
    %491 = vmatpush.bf16.msra.mxu0 %v433
    %492 = vmatpush.bf16.msra.mxu0 %v431
    %493 = vmatpush.bf16.msra.mxu0 %v429
    %494 = vmatmul.bf16.gmra.mxu0 %v321
    %v495 = vpop.f32.mrf.mxu0
    %v496 = vadd.f32 %v353, %v495
    %v497 = vpop.f32.mrf.mxu0
    %v498 = vadd.f32 %v353, %v497
    %499 = vmatmul.bf16.gmra.mxu0 %v323
    %v500 = vpop.f32.mrf.mxu0
    %v501 = vadd.f32 %v353, %v500
    %v502 = vpop.f32.mrf.mxu0
    %v503 = vadd.f32 %v353, %v502
    %504 = vmatmul.bf16.gmra.mxu0 %v325
    %v505 = vpop.f32.mrf.mxu0
    %v506 = vadd.f32 %v353, %v505
    %v507 = vpop.f32.mrf.mxu0
    %508 = vdwg.mxu0
    %509 = vmatpush.bf16.msra.mxu0 0
    %510 = vmatpush.bf16.msra.mxu0 0
    %511 = vmatpush.bf16.msra.mxu0 0
    %512 = vmatpush.bf16.msra.mxu0 0
    %513 = vmatpush.bf16.msra.mxu0 %v451
    %514 = vmatpush.bf16.msra.mxu0 %v449
    %515 = vmatpush.bf16.msra.mxu0 %v447
    %516 = vmatpush.bf16.msra.mxu0 %v445
    %517 = vmatmul.bf16.gmra.mxu0 %v478
    %v518 = vpop.f32.mrf.mxu0
    %v519 = vadd.f32 %v496, %v518
    %v520 = vpop.f32.mrf.mxu0
    %v521 = vadd.f32 %v498, %v520
    %522 = vmatmul.bf16.gmra.mxu0 %v481
    %v523 = vpop.f32.mrf.mxu0
    %v524 = vadd.f32 %v501, %v523
    %v525 = vpop.f32.mrf.mxu0
    %v526 = vadd.f32 %v503, %v525
    %527 = vmatmul.bf16.gmra.mxu0 %v484
    %v528 = vpop.f32.mrf.mxu0
    %v529 = vadd.f32 %v506, %v528
    %v530 = vpop.f32.mrf.mxu0
    %531 = vdwg.mxu0
    %532 = vmatpush.bf16.msra.mxu0 %v444
    %533 = vmatpush.bf16.msra.mxu0 %v442
    %534 = vmatpush.bf16.msra.mxu0 %v440
    %535 = vmatpush.bf16.msra.mxu0 %v438
    %536 = vmatpush.bf16.msra.mxu0 %v436
    %537 = vmatpush.bf16.msra.mxu0 %v434
    %538 = vmatpush.bf16.msra.mxu0 %v432
    %539 = vmatpush.bf16.msra.mxu0 %v430
    %540 = vmatmul.bf16.gmra.mxu0 %v321
    %v541 = vpop.f32.mrf.mxu0
    %v542 = vadd.f32 %v354, %v541
    %v543 = vpop.f32.mrf.mxu0
    %v544 = vadd.f32 %v354, %v543
    %545 = vmatmul.bf16.gmra.mxu0 %v323
    %v546 = vpop.f32.mrf.mxu0
    %v547 = vadd.f32 %v354, %v546
    %v548 = vpop.f32.mrf.mxu0
    %v549 = vadd.f32 %v354, %v548
    %550 = vmatmul.bf16.gmra.mxu0 %v325
    %v551 = vpop.f32.mrf.mxu0
    %v552 = vadd.f32 %v354, %v551
    %v553 = vpop.f32.mrf.mxu0
    %554 = vdwg.mxu0
    %555 = vmatpush.bf16.msra.mxu0 0
    %556 = vmatpush.bf16.msra.mxu0 0
    %557 = vmatpush.bf16.msra.mxu0 0
    %558 = vmatpush.bf16.msra.mxu0 0
    %559 = vmatpush.bf16.msra.mxu0 %v452
    %560 = vmatpush.bf16.msra.mxu0 %v450
    %561 = vmatpush.bf16.msra.mxu0 %v448
    %562 = vmatpush.bf16.msra.mxu0 %v446
    %563 = vmatmul.bf16.gmra.mxu0 %v478
    %v564 = vpop.f32.mrf.mxu0
    %v565 = vadd.f32 %v542, %v564
    %v566 = vpop.f32.mrf.mxu0
    %v567 = vadd.f32 %v544, %v566
    %568 = vmatmul.bf16.gmra.mxu0 %v481
    %v569 = vpop.f32.mrf.mxu0
    %v570 = vadd.f32 %v547, %v569
    %v571 = vpop.f32.mrf.mxu0
    %v572 = vadd.f32 %v549, %v571
    %573 = vmatmul.bf16.gmra.mxu0 %v484
    %v574 = vpop.f32.mrf.mxu0
    %v575 = vadd.f32 %v552, %v574
    %v576 = vpop.f32.mrf.mxu0
    %577 = vdwg.mxu0
    %v578 = vmax.f32 %v519, 0.0
    %v579 = vmax.f32 %v565, 0.0
    %v580 = vmax.f32 %v521, 0.0
    %v581 = vmax.f32 %v567, 0.0
    %v582 = vmax.f32 %v524, 0.0
    %v583 = vmax.f32 %v570, 0.0
    %v584 = vmax.f32 %v526, 0.0
    %v585 = vmax.f32 %v572, 0.0
    %v586 = vmax.f32 %v529, 0.0
    %v587 = vmax.f32 %v575, 0.0
    %vm594 = vcmask 1041408
    %v595 = vrot.slane %v578, 6
    %v596 = vrot.slane %v579, 6
    %v597 = vrot.slane %v580, 6
    %v598 = vsel %vm594, %v595, %v597
    %v599 = vrot.slane %v581, 6
    %v600 = vsel %vm594, %v596, %v599
    %v601 = vrot.slane %v582, 6
    %v602 = vsel %vm594, %v597, %v601
    %v603 = vrot.slane %v583, 6
    %v604 = vsel %vm594, %v599, %v603
    %611 = vst [vmem:[#allocation4] sm:$0xfc] %v595
    %612 = vst [vmem:[#allocation4 + $0x8] sm:$0xfc] %v596
    %613 = vst [vmem:[#allocation4 + $0x10] sm:$0xff] %v598
    %614 = vst [vmem:[#allocation4 + $0x18] sm:$0xff] %v600
    %615 = vst [vmem:[#allocation4 + $0x20] sm:$0xf] %v602
    %616 = vst [vmem:[#allocation4 + $0x28] sm:$0xf] %v604
    %vm621 = vcmask 1045504
    %v622 = vrot.slane %v582, 2
    %v623 = vrot.slane %v584, 2
    %v624 = vsel %vm621, %v622, %v623
    %v625 = vrot.slane %v583, 2
    %v626 = vrot.slane %v585, 2
    %v627 = vsel %vm621, %v625, %v626
    %v628 = vrot.slane %v586, 2
    %v629 = vsel %vm621, %v623, %v628
    %v630 = vrot.slane %v587, 2
    %v631 = vsel %vm621, %v626, %v630
    %638 = vst [vmem:[#allocation4 + $0x30] sm:$0xff] %v624
    %639 = vst [vmem:[#allocation4 + $0x38] sm:$0xff] %v627
    %640 = vst [vmem:[#allocation4 + $0x40] sm:$0xff] %v629
    %641 = vst [vmem:[#allocation4 + $0x48] sm:$0xff] %v631
    %642 = vst [vmem:[#allocation4 + $0x50] sm:$0x3] %v628
    %643 = vst [vmem:[#allocation4 + $0x58] sm:$0x3] %v630
    %v644 = vld [vmem:[#allocation4] sm:$0xff]
    %v645 = vld [vmem:[#allocation4 + $0x8] sm:$0xff]
    %v646 = vld [vmem:[#allocation4 + $0x10] sm:$0xff]
    %v647 = vld [vmem:[#allocation4 + $0x18] sm:$0xff]
    %v648 = vld [vmem:[#allocation4 + $0x20] sm:$0xff]
    %v649 = vld [vmem:[#allocation4 + $0x28] sm:$0xff]
    %v650 = vld [vmem:[#allocation4 + $0x30] sm:$0xff]
    %v651 = vld [vmem:[#allocation4 + $0x38] sm:$0xff]
    %v652 = vld [vmem:[#allocation4 + $0x40] sm:$0xff]
    %v653 = vld [vmem:[#allocation4 + $0x48] sm:$0xff]
    %v654 = vld [vmem:[#allocation4 + $0x50] sm:$0xf]
    %v655 = vld [vmem:[#allocation4 + $0x58] sm:$0xf]
    %v656 = vpack.c.bf16 %v645, %v644
    %v657 = vpack.c.bf16 %v647, %v646
    %v658 = vpack.c.bf16 %v649, %v648
    %v659 = vpack.c.bf16 %v651, %v650
    %v660 = vpack.c.bf16 %v653, %v652
    %v661 = vpack.c.bf16 %v655, %v654
    %v662 = vld [vmem:[#allocation9] sm:$0xff]
    %v663 = vld [vmem:[#allocation9 + $0x8] sm:$0xff]
    %v664 = vld [vmem:[#allocation9 + $0x10] sm:$0xff]
    %v665 = vld [vmem:[#allocation9 + $0x18] sm:$0xff]
    %v666 = vld [vmem:[#allocation9 + $0x20] sm:$0xff]
    %v667 = vld [vmem:[#allocation9 + $0x28] sm:$0xff]
    %v668 = vld [vmem:[#allocation9 + $0x30] sm:$0xff]
    %v669 = vld [vmem:[#allocation9 + $0x38] sm:$0xff]
    %v670 = vld [vmem:[#allocation9 + $0x40] sm:$0xff]
    %v671 = vld [vmem:[#allocation9 + $0x48] sm:$0xff]
    %v672 = vld [vmem:[#allocation9 + $0x50] sm:$0xff]
    %v673 = vld [vmem:[#allocation9 + $0x58] sm:$0xff]
    %v674 = vld [vmem:[#allocation9 + $0x60] sm:$0xff]
    %v675 = vld [vmem:[#allocation9 + $0x68] sm:$0xff]
    %v676 = vld [vmem:[#allocation9 + $0x70] sm:$0xff]
    %v677 = vld [vmem:[#allocation9 + $0x78] sm:$0xff]
    %v678 = vld [vmem:[#allocation9 + $0x80] sm:$0xff]
    %v679 = vld [vmem:[#allocation9 + $0x88] sm:$0xff]
    %v680 = vld [vmem:[#allocation9 + $0x90] sm:$0xff]
    %v681 = vld [vmem:[#allocation9 + $0x98] sm:$0xff]
    %v682 = vld [vmem:[#allocation9 + $0xa0] sm:$0xff]
    %v683 = vld [vmem:[#allocation9 + $0xa8] sm:$0xff]
    %v684 = vld [vmem:[#allocation9 + $0xb0] sm:$0xff]
    %v685 = vld [vmem:[#allocation9 + $0xb8] sm:$0xff]
    %v686 = vld [vmem:[#allocation9 + $0xc0] sm:$0xff]
    %v687 = vld [vmem:[#allocation9 + $0xc8] sm:$0xff]
    %v688 = vld [vmem:[#allocation9 + $0xd0] sm:$0xff]
    %v689 = vld [vmem:[#allocation9 + $0xd8] sm:$0xff]
    %v690 = vld [vmem:[#allocation9 + $0xe0] sm:$0xff]
    %v691 = vld [vmem:[#allocation9 + $0xe8] sm:$0xff]
    %v692 = vld [vmem:[#allocation9 + $0xf0] sm:$0xff]
    %v693 = vld [vmem:[#allocation9 + $0xf8] sm:$0xff]
    %v694 = vld [vmem:[#allocation9 + $0x100] sm:$0xff]
    %v695 = vld [vmem:[#allocation9 + $0x108] sm:$0xff]
    %v696 = vld [vmem:[#allocation9 + $0x110] sm:$0xff]
    %v697 = vld [vmem:[#allocation9 + $0x118] sm:$0xff]
    %v698 = vld [vmem:[#allocation9 + $0x120] sm:$0xff]
    %v699 = vld [vmem:[#allocation9 + $0x128] sm:$0xff]
    %v700 = vld [vmem:[#allocation9 + $0x130] sm:$0xff]
    %v701 = vld [vmem:[#allocation9 + $0x138] sm:$0xff]
    %v702 = vld [vmem:[#allocation9 + $0x140] sm:$0xff]
    %v703 = vld [vmem:[#allocation9 + $0x148] sm:$0xff]
    %v704 = vld [vmem:[#allocation9 + $0x150] sm:$0xff]
    %v705 = vld [vmem:[#allocation9 + $0x158] sm:$0xff]
    %v706 = vld [vmem:[#allocation9 + $0x160] sm:$0xff]
    %v707 = vld [vmem:[#allocation9 + $0x168] sm:$0xff]
    %v708 = vld [vmem:[#allocation9 + $0x170] sm:$0xff]
    %v709 = vld [vmem:[#allocation9 + $0x178] sm:$0xff]
    %v710 = vld [vmem:[#allocation9 + $0x180] sm:$0xff]
    %v711 = vld [vmem:[#allocation9 + $0x188] sm:$0xff]
    %v712 = vld [vmem:[#allocation9 + $0x190] sm:$0xff]
    %v713 = vld [vmem:[#allocation9 + $0x198] sm:$0xff]
    %v714 = vld [vmem:[#allocation9 + $0x1a0] sm:$0xff]
    %v715 = vld [vmem:[#allocation9 + $0x1a8] sm:$0xff]
    %v716 = vld [vmem:[#allocation9 + $0x1b0] sm:$0xff]
    %v717 = vld [vmem:[#allocation9 + $0x1b8] sm:$0xff]
    %v718 = vld [vmem:[#allocation9 + $0x1c0] sm:$0xff]
    %v719 = vld [vmem:[#allocation9 + $0x1c8] sm:$0xff]
    %v720 = vld [vmem:[#allocation9 + $0x1d0] sm:$0xff]
    %v721 = vld [vmem:[#allocation9 + $0x1d8] sm:$0xff]
    %v722 = vld [vmem:[#allocation9 + $0x1e0] sm:$0xff]
    %v723 = vld [vmem:[#allocation9 + $0x1e8] sm:$0xff]
    %v724 = vld [vmem:[#allocation9 + $0x1f0] sm:$0xff]
    %v725 = vld [vmem:[#allocation9 + $0x1f8] sm:$0xff]
    %s726 = scalar_lea.vmem [#allocation9], 512
    %v727 = vld [vmem:[%s726] sm:$0xff]
    %v728 = vld [vmem:[%s726 + $0x8] sm:$0xff]
    %v729 = vld [vmem:[%s726 + $0x10] sm:$0xff]
    %v730 = vld [vmem:[%s726 + $0x18] sm:$0xff]
    %v731 = vld [vmem:[%s726 + $0x20] sm:$0xff]
    %v732 = vld [vmem:[%s726 + $0x28] sm:$0xff]
    %v733 = vld [vmem:[%s726 + $0x30] sm:$0xff]
    %v734 = vld [vmem:[%s726 + $0x38] sm:$0xff]
    %v735 = vld [vmem:[%s726 + $0x40] sm:$0xff]
    %v736 = vld [vmem:[%s726 + $0x48] sm:$0xff]
    %v737 = vld [vmem:[%s726 + $0x50] sm:$0xff]
    %v738 = vld [vmem:[%s726 + $0x58] sm:$0xff]
    %v739 = vld [vmem:[%s726 + $0x60] sm:$0xff]
    %v740 = vld [vmem:[%s726 + $0x68] sm:$0xff]
    %v741 = vld [vmem:[%s726 + $0x70] sm:$0xff]
    %v742 = vld [vmem:[%s726 + $0x78] sm:$0xff]
    %v743 = vld [vmem:[%s726 + $0x80] sm:$0xff]
    %v744 = vld [vmem:[%s726 + $0x88] sm:$0xff]
    %v745 = vld [vmem:[%s726 + $0x90] sm:$0xff]
    %v746 = vld [vmem:[%s726 + $0x98] sm:$0xff]
    %v747 = vld [vmem:[%s726 + $0xa0] sm:$0xff]
    %v748 = vld [vmem:[%s726 + $0xa8] sm:$0xff]
    %v749 = vld [vmem:[%s726 + $0xb0] sm:$0xff]
    %v750 = vld [vmem:[%s726 + $0xb8] sm:$0xff]
    %v751 = vld [vmem:[%s726 + $0xc0] sm:$0xff]
    %v752 = vld [vmem:[%s726 + $0xc8] sm:$0xff]
    %v753 = vld [vmem:[%s726 + $0xd0] sm:$0xff]
    %v754 = vld [vmem:[%s726 + $0xd8] sm:$0xff]
    %v755 = vld [vmem:[%s726 + $0xe0] sm:$0xff]
    %v756 = vld [vmem:[%s726 + $0xe8] sm:$0xff]
    %v757 = vld [vmem:[%s726 + $0xf0] sm:$0xff]
    %v758 = vld [vmem:[%s726 + $0xf8] sm:$0xff]
    %v759 = vld [vmem:[%s726 + $0x100] sm:$0xff]
    %v760 = vld [vmem:[%s726 + $0x108] sm:$0xff]
    %v761 = vld [vmem:[%s726 + $0x110] sm:$0xff]
    %v762 = vld [vmem:[%s726 + $0x118] sm:$0xff]
    %v763 = vld [vmem:[%s726 + $0x120] sm:$0xff]
    %v764 = vld [vmem:[%s726 + $0x128] sm:$0xff]
    %v765 = vld [vmem:[%s726 + $0x130] sm:$0xff]
    %v766 = vld [vmem:[%s726 + $0x138] sm:$0xff]
    %v767 = vld [vmem:[%s726 + $0x140] sm:$0xff]
    %v768 = vld [vmem:[%s726 + $0x148] sm:$0xff]
    %v769 = vld [vmem:[%s726 + $0x150] sm:$0xff]
    %v770 = vld [vmem:[%s726 + $0x158] sm:$0xff]
    %v771 = vld [vmem:[%s726 + $0x160] sm:$0xff]
    %v772 = vld [vmem:[%s726 + $0x168] sm:$0xff]
    %v773 = vld [vmem:[%s726 + $0x170] sm:$0xff]
    %v774 = vld [vmem:[%s726 + $0x178] sm:$0xff]
    %v775 = vld [vmem:[%s726 + $0x180] sm:$0xff]
    %v776 = vld [vmem:[%s726 + $0x188] sm:$0xff]
    %v777 = vld [vmem:[%s726 + $0x190] sm:$0xff]
    %v778 = vld [vmem:[%s726 + $0x198] sm:$0xff]
    %v779 = vld [vmem:[%s726 + $0x1a0] sm:$0xff]
    %v780 = vld [vmem:[%s726 + $0x1a8] sm:$0xff]
    %v781 = vld [vmem:[%s726 + $0x1b0] sm:$0xff]
    %v782 = vld [vmem:[%s726 + $0x1b8] sm:$0xff]
    %v783 = vld [vmem:[%s726 + $0x1c0] sm:$0xff]
    %v784 = vld [vmem:[%s726 + $0x1c8] sm:$0xff]
    %v785 = vld [vmem:[%s726 + $0x1d0] sm:$0xff]
    %v786 = vld [vmem:[%s726 + $0x1d8] sm:$0xff]
    %v787 = vld [vmem:[%s726 + $0x1e0] sm:$0xff]
    %v788 = vld [vmem:[%s726 + $0x1e8] sm:$0xff]
    %v789 = vld [vmem:[%s726 + $0x1f0] sm:$0xff]
    %v790 = vld [vmem:[%s726 + $0x1f8] sm:$0xff]
    %v797 = vunpack.c.l.b16 %v656
    %v798 = vunpack.c.h.b16 %v656
    %v799 = vunpack.c.l.b16 %v657
    %v800 = vunpack.c.h.b16 %v657
    %v801 = vunpack.c.l.b16 %v658
    %v802 = vunpack.c.h.b16 %v658
    %v803 = vunpack.c.l.b16 %v659
    %v804 = vunpack.c.h.b16 %v659
    %v805 = vunpack.c.l.b16 %v660
    %v806 = vunpack.c.h.b16 %v660
    %v807 = vunpack.c.l.b16 %v661
    %v808 = vunpack.c.h.b16 %v661
    %v809 = vpack.c.b16 %v799, %v797
    %v810 = vpack.c.b16 %v800, %v798
    %v811 = vpack.c.b16 %v803, %v801
    %v812 = vpack.c.b16 %v804, %v802
    %v813 = vpack.c.b16 %v807, %v805
    %v814 = vpack.c.b16 %v808, %v806
    %vm815 = vsmask.f32 7424
    %v817 = vshrl.u32 %v809, 16
    %v819 = vshll.u32 %v809, 16
    %v821 = vrot.slane %v819, 1
    %v822 = vor.u32 %v817, %v821
    %v824 = vshll.u32 %v811, 16
    %v826 = vrot.slane %v824, 1
    %v827 = vsel %vm815, %v822, %v826
    %v829 = vshrl.u32 %v810, 16
    %v831 = vshll.u32 %v810, 16
    %v833 = vrot.slane %v831, 1
    %v834 = vor.u32 %v829, %v833
    %v836 = vshll.u32 %v812, 16
    %v838 = vrot.slane %v836, 1
    %v839 = vsel %vm815, %v834, %v838
    %v840 = vshrl.u32 %v811, 16
    %v842 = vor.u32 %v840, %v826
    %v844 = vshll.u32 %v813, 16
    %v846 = vrot.slane %v844, 1
    %v847 = vsel %vm815, %v842, %v846
    %v848 = vshrl.u32 %v812, 16
    %v850 = vor.u32 %v848, %v838
    %v852 = vshll.u32 %v814, 16
    %v854 = vrot.slane %v852, 1
    %v855 = vsel %vm815, %v850, %v854
    %v856 = vshrl.u32 %v813, 16
    %v858 = vor.u32 %v856, %v846
    %v859 = vshrl.u32 %v814, 16
    %v861 = vor.u32 %v859, %v854
    %v932 = vunpack.c.l.b16 %v727
    %v933 = vunpack.c.h.b16 %v727
    %v934 = vunpack.c.l.b16 %v728
    %v935 = vunpack.c.h.b16 %v728
    %v936 = vunpack.c.l.b16 %v729
    %v937 = vunpack.c.h.b16 %v729
    %v938 = vunpack.c.l.b16 %v730
    %v939 = vunpack.c.h.b16 %v730
    %v940 = vunpack.c.l.b16 %v731
    %v941 = vunpack.c.h.b16 %v731
    %v942 = vunpack.c.l.b16 %v732
    %v943 = vunpack.c.h.b16 %v732
    %v944 = vunpack.c.l.b16 %v733
    %v945 = vunpack.c.h.b16 %v733
    %v946 = vunpack.c.l.b16 %v734
    %v947 = vunpack.c.h.b16 %v734
    %v948 = vunpack.c.l.b16 %v735
    %v949 = vunpack.c.h.b16 %v735
    %v950 = vunpack.c.l.b16 %v736
    %v951 = vunpack.c.h.b16 %v736
    %v952 = vunpack.c.l.b16 %v737
    %v953 = vunpack.c.h.b16 %v737
    %v954 = vunpack.c.l.b16 %v738
    %v955 = vunpack.c.h.b16 %v738
    %v956 = vunpack.c.l.b16 %v739
    %v957 = vunpack.c.h.b16 %v739
    %v958 = vunpack.c.l.b16 %v740
    %v959 = vunpack.c.h.b16 %v740
    %v960 = vunpack.c.l.b16 %v741
    %v961 = vunpack.c.h.b16 %v741
    %v962 = vunpack.c.l.b16 %v742
    %v963 = vunpack.c.h.b16 %v742
    %v964 = vunpack.c.l.b16 %v743
    %v965 = vunpack.c.h.b16 %v743
    %v966 = vunpack.c.l.b16 %v744
    %v967 = vunpack.c.h.b16 %v744
    %v968 = vunpack.c.l.b16 %v745
    %v969 = vunpack.c.h.b16 %v745
    %v970 = vunpack.c.l.b16 %v746
    %v971 = vunpack.c.h.b16 %v746
    %v972 = vunpack.c.l.b16 %v747
    %v973 = vunpack.c.h.b16 %v747
    %v974 = vunpack.c.l.b16 %v748
    %v975 = vunpack.c.h.b16 %v748
    %v976 = vunpack.c.l.b16 %v749
    %v977 = vunpack.c.h.b16 %v749
    %v978 = vunpack.c.l.b16 %v750
    %v979 = vunpack.c.h.b16 %v750
    %v980 = vunpack.c.l.b16 %v751
    %v981 = vunpack.c.h.b16 %v751
    %v982 = vunpack.c.l.b16 %v752
    %v983 = vunpack.c.h.b16 %v752
    %v984 = vunpack.c.l.b16 %v753
    %v985 = vunpack.c.h.b16 %v753
    %v986 = vunpack.c.l.b16 %v754
    %v987 = vunpack.c.h.b16 %v754
    %v988 = vunpack.c.l.b16 %v755
    %v989 = vunpack.c.h.b16 %v755
    %v990 = vunpack.c.l.b16 %v756
    %v991 = vunpack.c.h.b16 %v756
    %v992 = vunpack.c.l.b16 %v757
    %v993 = vunpack.c.h.b16 %v757
    %v994 = vunpack.c.l.b16 %v758
    %v995 = vunpack.c.h.b16 %v758
    %v996 = vunpack.c.l.b16 %v759
    %v997 = vunpack.c.h.b16 %v759
    %v998 = vunpack.c.l.b16 %v760
    %v999 = vunpack.c.h.b16 %v760
    %v1000 = vunpack.c.l.b16 %v761
    %v1001 = vunpack.c.h.b16 %v761
    %v1002 = vunpack.c.l.b16 %v762
    %v1003 = vunpack.c.h.b16 %v762
    %v1004 = vunpack.c.l.b16 %v763
    %v1005 = vunpack.c.h.b16 %v763
    %v1006 = vunpack.c.l.b16 %v764
    %v1007 = vunpack.c.h.b16 %v764
    %v1008 = vunpack.c.l.b16 %v765
    %v1009 = vunpack.c.h.b16 %v765
    %v1010 = vunpack.c.l.b16 %v766
    %v1011 = vunpack.c.h.b16 %v766
    %v1012 = vunpack.c.l.b16 %v767
    %v1013 = vunpack.c.h.b16 %v767
    %v1014 = vunpack.c.l.b16 %v768
    %v1015 = vunpack.c.h.b16 %v768
    %v1016 = vunpack.c.l.b16 %v769
    %v1017 = vunpack.c.h.b16 %v769
    %v1018 = vunpack.c.l.b16 %v770
    %v1019 = vunpack.c.h.b16 %v770
    %v1020 = vunpack.c.l.b16 %v771
    %v1021 = vunpack.c.h.b16 %v771
    %v1022 = vunpack.c.l.b16 %v772
    %v1023 = vunpack.c.h.b16 %v772
    %v1024 = vunpack.c.l.b16 %v773
    %v1025 = vunpack.c.h.b16 %v773
    %v1026 = vunpack.c.l.b16 %v774
    %v1027 = vunpack.c.h.b16 %v774
    %v1028 = vunpack.c.l.b16 %v775
    %v1029 = vunpack.c.h.b16 %v775
    %v1030 = vunpack.c.l.b16 %v776
    %v1031 = vunpack.c.h.b16 %v776
    %v1032 = vunpack.c.l.b16 %v777
    %v1033 = vunpack.c.h.b16 %v777
    %v1034 = vunpack.c.l.b16 %v778
    %v1035 = vunpack.c.h.b16 %v778
    %v1036 = vunpack.c.l.b16 %v779
    %v1037 = vunpack.c.h.b16 %v779
    %v1038 = vunpack.c.l.b16 %v780
    %v1039 = vunpack.c.h.b16 %v780
    %v1040 = vunpack.c.l.b16 %v781
    %v1041 = vunpack.c.h.b16 %v781
    %v1042 = vunpack.c.l.b16 %v782
    %v1043 = vunpack.c.h.b16 %v782
    %v1044 = vunpack.c.l.b16 %v783
    %v1045 = vunpack.c.h.b16 %v783
    %v1046 = vunpack.c.l.b16 %v784
    %v1047 = vunpack.c.h.b16 %v784
    %v1048 = vunpack.c.l.b16 %v785
    %v1049 = vunpack.c.h.b16 %v785
    %v1050 = vunpack.c.l.b16 %v786
    %v1051 = vunpack.c.h.b16 %v786
    %v1052 = vunpack.c.l.b16 %v787
    %v1053 = vunpack.c.h.b16 %v787
    %v1054 = vunpack.c.l.b16 %v788
    %v1055 = vunpack.c.h.b16 %v788
    %v1056 = vunpack.c.l.b16 %v789
    %v1057 = vunpack.c.h.b16 %v789
    %v1058 = vunpack.c.l.b16 %v790
    %v1059 = vunpack.c.h.b16 %v790
    %v1060 = vpack.c.b16 %v936, %v932
    %v1061 = vpack.c.b16 %v937, %v933
    %v1062 = vpack.c.b16 %v938, %v934
    %v1063 = vpack.c.b16 %v939, %v935
    %v1064 = vpack.c.b16 %v944, %v940
    %v1065 = vpack.c.b16 %v945, %v941
    %v1066 = vpack.c.b16 %v946, %v942
    %v1067 = vpack.c.b16 %v947, %v943
    %v1068 = vpack.c.b16 %v952, %v948
    %v1069 = vpack.c.b16 %v953, %v949
    %v1070 = vpack.c.b16 %v954, %v950
    %v1071 = vpack.c.b16 %v955, %v951
    %v1072 = vpack.c.b16 %v960, %v956
    %v1073 = vpack.c.b16 %v961, %v957
    %v1074 = vpack.c.b16 %v962, %v958
    %v1075 = vpack.c.b16 %v963, %v959
    %v1076 = vpack.c.b16 %v968, %v964
    %v1077 = vpack.c.b16 %v969, %v965
    %v1078 = vpack.c.b16 %v970, %v966
    %v1079 = vpack.c.b16 %v971, %v967
    %v1080 = vpack.c.b16 %v976, %v972
    %v1081 = vpack.c.b16 %v977, %v973
    %v1082 = vpack.c.b16 %v978, %v974
    %v1083 = vpack.c.b16 %v979, %v975
    %v1084 = vpack.c.b16 %v984, %v980
    %v1085 = vpack.c.b16 %v985, %v981
    %v1086 = vpack.c.b16 %v986, %v982
    %v1087 = vpack.c.b16 %v987, %v983
    %v1088 = vpack.c.b16 %v992, %v988
    %v1089 = vpack.c.b16 %v993, %v989
    %v1090 = vpack.c.b16 %v994, %v990
    %v1091 = vpack.c.b16 %v995, %v991
    %v1092 = vpack.c.b16 %v1000, %v996
    %v1093 = vpack.c.b16 %v1001, %v997
    %v1094 = vpack.c.b16 %v1002, %v998
    %v1095 = vpack.c.b16 %v1003, %v999
    %v1096 = vpack.c.b16 %v1008, %v1004
    %v1097 = vpack.c.b16 %v1009, %v1005
    %v1098 = vpack.c.b16 %v1010, %v1006
    %v1099 = vpack.c.b16 %v1011, %v1007
    %v1100 = vpack.c.b16 %v1016, %v1012
    %v1101 = vpack.c.b16 %v1017, %v1013
    %v1102 = vpack.c.b16 %v1018, %v1014
    %v1103 = vpack.c.b16 %v1019, %v1015
    %v1104 = vpack.c.b16 %v1024, %v1020
    %v1105 = vpack.c.b16 %v1025, %v1021
    %v1106 = vpack.c.b16 %v1026, %v1022
    %v1107 = vpack.c.b16 %v1027, %v1023
    %v1108 = vpack.c.b16 %v1032, %v1028
    %v1109 = vpack.c.b16 %v1033, %v1029
    %v1110 = vpack.c.b16 %v1034, %v1030
    %v1111 = vpack.c.b16 %v1035, %v1031
    %v1112 = vpack.c.b16 %v1040, %v1036
    %v1113 = vpack.c.b16 %v1041, %v1037
    %v1114 = vpack.c.b16 %v1042, %v1038
    %v1115 = vpack.c.b16 %v1043, %v1039
    %v1116 = vpack.c.b16 %v1048, %v1044
    %v1117 = vpack.c.b16 %v1049, %v1045
    %v1118 = vpack.c.b16 %v1050, %v1046
    %v1119 = vpack.c.b16 %v1051, %v1047
    %v1120 = vpack.c.b16 %v1056, %v1052
    %v1121 = vpack.c.b16 %v1057, %v1053
    %v1122 = vpack.c.b16 %v1058, %v1054
    %v1123 = vpack.c.b16 %v1059, %v1055
    %1188 = vmatpush.bf16.msra.mxu0 %v1088
    %1189 = vmatpush.bf16.msra.mxu0 %v1084
    %1190 = vmatpush.bf16.msra.mxu0 %v1080
    %1191 = vmatpush.bf16.msra.mxu0 %v1076
    %1192 = vmatpush.bf16.msra.mxu0 %v1072
    %1193 = vmatpush.bf16.msra.mxu0 %v1068
    %1194 = vmatpush.bf16.msra.mxu0 %v1064
    %1195 = vmatpush.bf16.msra.mxu0 %v1060
    %1196 = vmatmul.bf16.gmra.mxu0 %v827
    %v1197 = vpop.f32.mrf.mxu0
    %v1198 = vadd.f32 0.0, %v1197
    %v1199 = vpop.f32.mrf.mxu0
    %v1200 = vadd.f32 0.0, %v1199
    %1201 = vmatmul.bf16.gmra.mxu0 %v847
    %v1202 = vpop.f32.mrf.mxu0
    %v1203 = vadd.f32 0.0, %v1202
    %v1204 = vpop.f32.mrf.mxu0
    %v1205 = vadd.f32 0.0, %v1204
    %1206 = vmatmul.bf16.gmra.mxu0 %v858
    %v1207 = vpop.f32.mrf.mxu0
    %v1208 = vadd.f32 0.0, %v1207
    %v1209 = vpop.f32.mrf.mxu0
    %v1210 = vadd.f32 0.0, %v1209
    %1211 = vdwg.mxu0
    %1212 = vmatpush.bf16.msra.mxu0 %v1120
    %1213 = vmatpush.bf16.msra.mxu0 %v1116
    %1214 = vmatpush.bf16.msra.mxu0 %v1112
    %1215 = vmatpush.bf16.msra.mxu0 %v1108
    %1216 = vmatpush.bf16.msra.mxu0 %v1104
    %1217 = vmatpush.bf16.msra.mxu0 %v1100
    %1218 = vmatpush.bf16.msra.mxu0 %v1096
    %1219 = vmatpush.bf16.msra.mxu0 %v1092
    %1220 = vmatmul.bf16.gmra.mxu0 %v839
    %v1221 = vpop.f32.mrf.mxu0
    %v1222 = vadd.f32 %v1198, %v1221
    %v1223 = vpop.f32.mrf.mxu0
    %v1224 = vadd.f32 %v1200, %v1223
    %1225 = vmatmul.bf16.gmra.mxu0 %v855
    %v1226 = vpop.f32.mrf.mxu0
    %v1227 = vadd.f32 %v1203, %v1226
    %v1228 = vpop.f32.mrf.mxu0
    %v1229 = vadd.f32 %v1205, %v1228
    %1230 = vmatmul.bf16.gmra.mxu0 %v861
    %v1231 = vpop.f32.mrf.mxu0
    %v1232 = vadd.f32 %v1208, %v1231
    %v1233 = vpop.f32.mrf.mxu0
    %v1234 = vadd.f32 %v1210, %v1233
    %1235 = vdwg.mxu0
    %1236 = vmatpush.bf16.msra.mxu0 %v1089
    %1237 = vmatpush.bf16.msra.mxu0 %v1085
    %1238 = vmatpush.bf16.msra.mxu0 %v1081
    %1239 = vmatpush.bf16.msra.mxu0 %v1077
    %1240 = vmatpush.bf16.msra.mxu0 %v1073
    %1241 = vmatpush.bf16.msra.mxu0 %v1069
    %1242 = vmatpush.bf16.msra.mxu0 %v1065
    %1243 = vmatpush.bf16.msra.mxu0 %v1061
    %1244 = vmatmul.bf16.gmra.mxu0 %v827
    %v1245 = vpop.f32.mrf.mxu0
    %v1246 = vadd.f32 0.0, %v1245
    %v1247 = vpop.f32.mrf.mxu0
    %v1248 = vadd.f32 0.0, %v1247
    %1249 = vmatmul.bf16.gmra.mxu0 %v847
    %v1250 = vpop.f32.mrf.mxu0
    %v1251 = vadd.f32 0.0, %v1250
    %v1252 = vpop.f32.mrf.mxu0
    %v1253 = vadd.f32 0.0, %v1252
    %1254 = vmatmul.bf16.gmra.mxu0 %v858
    %v1255 = vpop.f32.mrf.mxu0
    %v1256 = vadd.f32 0.0, %v1255
    %v1257 = vpop.f32.mrf.mxu0
    %v1258 = vadd.f32 0.0, %v1257
    %1259 = vdwg.mxu0
    %1260 = vmatpush.bf16.msra.mxu0 %v1121
    %1261 = vmatpush.bf16.msra.mxu0 %v1117
    %1262 = vmatpush.bf16.msra.mxu0 %v1113
    %1263 = vmatpush.bf16.msra.mxu0 %v1109
    %1264 = vmatpush.bf16.msra.mxu0 %v1105
    %1265 = vmatpush.bf16.msra.mxu0 %v1101
    %1266 = vmatpush.bf16.msra.mxu0 %v1097
    %1267 = vmatpush.bf16.msra.mxu0 %v1093
    %1268 = vmatmul.bf16.gmra.mxu0 %v839
    %v1269 = vpop.f32.mrf.mxu0
    %v1270 = vadd.f32 %v1246, %v1269
    %v1271 = vpop.f32.mrf.mxu0
    %v1272 = vadd.f32 %v1248, %v1271
    %1273 = vmatmul.bf16.gmra.mxu0 %v855
    %v1274 = vpop.f32.mrf.mxu0
    %v1275 = vadd.f32 %v1251, %v1274
    %v1276 = vpop.f32.mrf.mxu0
    %v1277 = vadd.f32 %v1253, %v1276
    %1278 = vmatmul.bf16.gmra.mxu0 %v861
    %v1279 = vpop.f32.mrf.mxu0
    %v1280 = vadd.f32 %v1256, %v1279
    %v1281 = vpop.f32.mrf.mxu0
    %v1282 = vadd.f32 %v1258, %v1281
    %1283 = vdwg.mxu0
    %1284 = vmatpush.bf16.msra.mxu0 %v1090
    %1285 = vmatpush.bf16.msra.mxu0 %v1086
    %1286 = vmatpush.bf16.msra.mxu0 %v1082
    %1287 = vmatpush.bf16.msra.mxu0 %v1078
    %1288 = vmatpush.bf16.msra.mxu0 %v1074
    %1289 = vmatpush.bf16.msra.mxu0 %v1070
    %1290 = vmatpush.bf16.msra.mxu0 %v1066
    %1291 = vmatpush.bf16.msra.mxu0 %v1062
    %1292 = vmatmul.bf16.gmra.mxu0 %v827
    %v1293 = vpop.f32.mrf.mxu0
    %v1294 = vadd.f32 0.0, %v1293
    %v1295 = vpop.f32.mrf.mxu0
    %v1296 = vadd.f32 0.0, %v1295
    %1297 = vmatmul.bf16.gmra.mxu0 %v847
    %v1298 = vpop.f32.mrf.mxu0
    %v1299 = vadd.f32 0.0, %v1298
    %v1300 = vpop.f32.mrf.mxu0
    %v1301 = vadd.f32 0.0, %v1300
    %1302 = vmatmul.bf16.gmra.mxu0 %v858
    %v1303 = vpop.f32.mrf.mxu0
    %v1304 = vadd.f32 0.0, %v1303
    %v1305 = vpop.f32.mrf.mxu0
    %v1306 = vadd.f32 0.0, %v1305
    %1307 = vdwg.mxu0
    %1308 = vmatpush.bf16.msra.mxu0 %v1122
    %1309 = vmatpush.bf16.msra.mxu0 %v1118
    %1310 = vmatpush.bf16.msra.mxu0 %v1114
    %1311 = vmatpush.bf16.msra.mxu0 %v1110
    %1312 = vmatpush.bf16.msra.mxu0 %v1106
    %1313 = vmatpush.bf16.msra.mxu0 %v1102
    %1314 = vmatpush.bf16.msra.mxu0 %v1098
    %1315 = vmatpush.bf16.msra.mxu0 %v1094
    %1316 = vmatmul.bf16.gmra.mxu0 %v839
    %v1317 = vpop.f32.mrf.mxu0
    %v1318 = vadd.f32 %v1294, %v1317
    %v1319 = vpop.f32.mrf.mxu0
    %v1320 = vadd.f32 %v1296, %v1319
    %1321 = vmatmul.bf16.gmra.mxu0 %v855
    %v1322 = vpop.f32.mrf.mxu0
    %v1323 = vadd.f32 %v1299, %v1322
    %v1324 = vpop.f32.mrf.mxu0
    %v1325 = vadd.f32 %v1301, %v1324
    %1326 = vmatmul.bf16.gmra.mxu0 %v861
    %v1327 = vpop.f32.mrf.mxu0
    %v1328 = vadd.f32 %v1304, %v1327
    %v1329 = vpop.f32.mrf.mxu0
    %v1330 = vadd.f32 %v1306, %v1329
    %1331 = vdwg.mxu0
    %1332 = vmatpush.bf16.msra.mxu0 %v1091
    %1333 = vmatpush.bf16.msra.mxu0 %v1087
    %1334 = vmatpush.bf16.msra.mxu0 %v1083
    %1335 = vmatpush.bf16.msra.mxu0 %v1079
    %1336 = vmatpush.bf16.msra.mxu0 %v1075
    %1337 = vmatpush.bf16.msra.mxu0 %v1071
    %1338 = vmatpush.bf16.msra.mxu0 %v1067
    %1339 = vmatpush.bf16.msra.mxu0 %v1063
    %1340 = vmatmul.bf16.gmra.mxu0 %v827
    %v1341 = vpop.f32.mrf.mxu0
    %v1342 = vadd.f32 0.0, %v1341
    %v1343 = vpop.f32.mrf.mxu0
    %v1344 = vadd.f32 0.0, %v1343
    %1345 = vmatmul.bf16.gmra.mxu0 %v847
    %v1346 = vpop.f32.mrf.mxu0
    %v1347 = vadd.f32 0.0, %v1346
    %v1348 = vpop.f32.mrf.mxu0
    %v1349 = vadd.f32 0.0, %v1348
    %1350 = vmatmul.bf16.gmra.mxu0 %v858
    %v1351 = vpop.f32.mrf.mxu0
    %v1352 = vadd.f32 0.0, %v1351
    %v1353 = vpop.f32.mrf.mxu0
    %v1354 = vadd.f32 0.0, %v1353
    %1355 = vdwg.mxu0
    %1356 = vmatpush.bf16.msra.mxu0 %v1123
    %1357 = vmatpush.bf16.msra.mxu0 %v1119
    %1358 = vmatpush.bf16.msra.mxu0 %v1115
    %1359 = vmatpush.bf16.msra.mxu0 %v1111
    %1360 = vmatpush.bf16.msra.mxu0 %v1107
    %1361 = vmatpush.bf16.msra.mxu0 %v1103
    %1362 = vmatpush.bf16.msra.mxu0 %v1099
    %1363 = vmatpush.bf16.msra.mxu0 %v1095
    %1364 = vmatmul.bf16.gmra.mxu0 %v839
    %v1365 = vpop.f32.mrf.mxu0
    %v1366 = vadd.f32 %v1342, %v1365
    %v1367 = vpop.f32.mrf.mxu0
    %v1368 = vadd.f32 %v1344, %v1367
    %1369 = vmatmul.bf16.gmra.mxu0 %v855
    %v1370 = vpop.f32.mrf.mxu0
    %v1371 = vadd.f32 %v1347, %v1370
    %v1372 = vpop.f32.mrf.mxu0
    %v1373 = vadd.f32 %v1349, %v1372
    %1374 = vmatmul.bf16.gmra.mxu0 %v861
    %v1375 = vpop.f32.mrf.mxu0
    %v1376 = vadd.f32 %v1352, %v1375
    %v1377 = vpop.f32.mrf.mxu0
    %v1378 = vadd.f32 %v1354, %v1377
    %1379 = vdwg.mxu0
    %v1450 = vunpack.c.l.b16 %v662
    %v1451 = vunpack.c.h.b16 %v662
    %v1452 = vunpack.c.l.b16 %v663
    %v1453 = vunpack.c.h.b16 %v663
    %v1454 = vunpack.c.l.b16 %v664
    %v1455 = vunpack.c.h.b16 %v664
    %v1456 = vunpack.c.l.b16 %v665
    %v1457 = vunpack.c.h.b16 %v665
    %v1458 = vunpack.c.l.b16 %v666
    %v1459 = vunpack.c.h.b16 %v666
    %v1460 = vunpack.c.l.b16 %v667
    %v1461 = vunpack.c.h.b16 %v667
    %v1462 = vunpack.c.l.b16 %v668
    %v1463 = vunpack.c.h.b16 %v668
    %v1464 = vunpack.c.l.b16 %v669
    %v1465 = vunpack.c.h.b16 %v669
    %v1466 = vunpack.c.l.b16 %v670
    %v1467 = vunpack.c.h.b16 %v670
    %v1468 = vunpack.c.l.b16 %v671
    %v1469 = vunpack.c.h.b16 %v671
    %v1470 = vunpack.c.l.b16 %v672
    %v1471 = vunpack.c.h.b16 %v672
    %v1472 = vunpack.c.l.b16 %v673
    %v1473 = vunpack.c.h.b16 %v673
    %v1474 = vunpack.c.l.b16 %v674
    %v1475 = vunpack.c.h.b16 %v674
    %v1476 = vunpack.c.l.b16 %v675
    %v1477 = vunpack.c.h.b16 %v675
    %v1478 = vunpack.c.l.b16 %v676
    %v1479 = vunpack.c.h.b16 %v676
    %v1480 = vunpack.c.l.b16 %v677
    %v1481 = vunpack.c.h.b16 %v677
    %v1482 = vunpack.c.l.b16 %v678
    %v1483 = vunpack.c.h.b16 %v678
    %v1484 = vunpack.c.l.b16 %v679
    %v1485 = vunpack.c.h.b16 %v679
    %v1486 = vunpack.c.l.b16 %v680
    %v1487 = vunpack.c.h.b16 %v680
    %v1488 = vunpack.c.l.b16 %v681
    %v1489 = vunpack.c.h.b16 %v681
    %v1490 = vunpack.c.l.b16 %v682
    %v1491 = vunpack.c.h.b16 %v682
    %v1492 = vunpack.c.l.b16 %v683
    %v1493 = vunpack.c.h.b16 %v683
    %v1494 = vunpack.c.l.b16 %v684
    %v1495 = vunpack.c.h.b16 %v684
    %v1496 = vunpack.c.l.b16 %v685
    %v1497 = vunpack.c.h.b16 %v685
    %v1498 = vunpack.c.l.b16 %v686
    %v1499 = vunpack.c.h.b16 %v686
    %v1500 = vunpack.c.l.b16 %v687
    %v1501 = vunpack.c.h.b16 %v687
    %v1502 = vunpack.c.l.b16 %v688
    %v1503 = vunpack.c.h.b16 %v688
    %v1504 = vunpack.c.l.b16 %v689
    %v1505 = vunpack.c.h.b16 %v689
    %v1506 = vunpack.c.l.b16 %v690
    %v1507 = vunpack.c.h.b16 %v690
    %v1508 = vunpack.c.l.b16 %v691
    %v1509 = vunpack.c.h.b16 %v691
    %v1510 = vunpack.c.l.b16 %v692
    %v1511 = vunpack.c.h.b16 %v692
    %v1512 = vunpack.c.l.b16 %v693
    %v1513 = vunpack.c.h.b16 %v693
    %v1514 = vunpack.c.l.b16 %v694
    %v1515 = vunpack.c.h.b16 %v694
    %v1516 = vunpack.c.l.b16 %v695
    %v1517 = vunpack.c.h.b16 %v695
    %v1518 = vunpack.c.l.b16 %v696
    %v1519 = vunpack.c.h.b16 %v696
    %v1520 = vunpack.c.l.b16 %v697
    %v1521 = vunpack.c.h.b16 %v697
    %v1522 = vunpack.c.l.b16 %v698
    %v1523 = vunpack.c.h.b16 %v698
    %v1524 = vunpack.c.l.b16 %v699
    %v1525 = vunpack.c.h.b16 %v699
    %v1526 = vunpack.c.l.b16 %v700
    %v1527 = vunpack.c.h.b16 %v700
    %v1528 = vunpack.c.l.b16 %v701
    %v1529 = vunpack.c.h.b16 %v701
    %v1530 = vunpack.c.l.b16 %v702
    %v1531 = vunpack.c.h.b16 %v702
    %v1532 = vunpack.c.l.b16 %v703
    %v1533 = vunpack.c.h.b16 %v703
    %v1534 = vunpack.c.l.b16 %v704
    %v1535 = vunpack.c.h.b16 %v704
    %v1536 = vunpack.c.l.b16 %v705
    %v1537 = vunpack.c.h.b16 %v705
    %v1538 = vunpack.c.l.b16 %v706
    %v1539 = vunpack.c.h.b16 %v706
    %v1540 = vunpack.c.l.b16 %v707
    %v1541 = vunpack.c.h.b16 %v707
    %v1542 = vunpack.c.l.b16 %v708
    %v1543 = vunpack.c.h.b16 %v708
    %v1544 = vunpack.c.l.b16 %v709
    %v1545 = vunpack.c.h.b16 %v709
    %v1546 = vunpack.c.l.b16 %v710
    %v1547 = vunpack.c.h.b16 %v710
    %v1548 = vunpack.c.l.b16 %v711
    %v1549 = vunpack.c.h.b16 %v711
    %v1550 = vunpack.c.l.b16 %v712
    %v1551 = vunpack.c.h.b16 %v712
    %v1552 = vunpack.c.l.b16 %v713
    %v1553 = vunpack.c.h.b16 %v713
    %v1554 = vunpack.c.l.b16 %v714
    %v1555 = vunpack.c.h.b16 %v714
    %v1556 = vunpack.c.l.b16 %v715
    %v1557 = vunpack.c.h.b16 %v715
    %v1558 = vunpack.c.l.b16 %v716
    %v1559 = vunpack.c.h.b16 %v716
    %v1560 = vunpack.c.l.b16 %v717
    %v1561 = vunpack.c.h.b16 %v717
    %v1562 = vunpack.c.l.b16 %v718
    %v1563 = vunpack.c.h.b16 %v718
    %v1564 = vunpack.c.l.b16 %v719
    %v1565 = vunpack.c.h.b16 %v719
    %v1566 = vunpack.c.l.b16 %v720
    %v1567 = vunpack.c.h.b16 %v720
    %v1568 = vunpack.c.l.b16 %v721
    %v1569 = vunpack.c.h.b16 %v721
    %v1570 = vunpack.c.l.b16 %v722
    %v1571 = vunpack.c.h.b16 %v722
    %v1572 = vunpack.c.l.b16 %v723
    %v1573 = vunpack.c.h.b16 %v723
    %v1574 = vunpack.c.l.b16 %v724
    %v1575 = vunpack.c.h.b16 %v724
    %v1576 = vunpack.c.l.b16 %v725
    %v1577 = vunpack.c.h.b16 %v725
    %v1578 = vpack.c.b16 %v1454, %v1450
    %v1579 = vpack.c.b16 %v1455, %v1451
    %v1580 = vpack.c.b16 %v1456, %v1452
    %v1581 = vpack.c.b16 %v1457, %v1453
    %v1582 = vpack.c.b16 %v1462, %v1458
    %v1583 = vpack.c.b16 %v1463, %v1459
    %v1584 = vpack.c.b16 %v1464, %v1460
    %v1585 = vpack.c.b16 %v1465, %v1461
    %v1586 = vpack.c.b16 %v1470, %v1466
    %v1587 = vpack.c.b16 %v1471, %v1467
    %v1588 = vpack.c.b16 %v1472, %v1468
    %v1589 = vpack.c.b16 %v1473, %v1469
    %v1590 = vpack.c.b16 %v1478, %v1474
    %v1591 = vpack.c.b16 %v1479, %v1475
    %v1592 = vpack.c.b16 %v1480, %v1476
    %v1593 = vpack.c.b16 %v1481, %v1477
    %v1594 = vpack.c.b16 %v1486, %v1482
    %v1595 = vpack.c.b16 %v1487, %v1483
    %v1596 = vpack.c.b16 %v1488, %v1484
    %v1597 = vpack.c.b16 %v1489, %v1485
    %v1598 = vpack.c.b16 %v1494, %v1490
    %v1599 = vpack.c.b16 %v1495, %v1491
    %v1600 = vpack.c.b16 %v1496, %v1492
    %v1601 = vpack.c.b16 %v1497, %v1493
    %v1602 = vpack.c.b16 %v1502, %v1498
    %v1603 = vpack.c.b16 %v1503, %v1499
    %v1604 = vpack.c.b16 %v1504, %v1500
    %v1605 = vpack.c.b16 %v1505, %v1501
    %v1606 = vpack.c.b16 %v1510, %v1506
    %v1607 = vpack.c.b16 %v1511, %v1507
    %v1608 = vpack.c.b16 %v1512, %v1508
    %v1609 = vpack.c.b16 %v1513, %v1509
    %v1610 = vpack.c.b16 %v1518, %v1514
    %v1611 = vpack.c.b16 %v1519, %v1515
    %v1612 = vpack.c.b16 %v1520, %v1516
    %v1613 = vpack.c.b16 %v1521, %v1517
    %v1614 = vpack.c.b16 %v1526, %v1522
    %v1615 = vpack.c.b16 %v1527, %v1523
    %v1616 = vpack.c.b16 %v1528, %v1524
    %v1617 = vpack.c.b16 %v1529, %v1525
    %v1618 = vpack.c.b16 %v1534, %v1530
    %v1619 = vpack.c.b16 %v1535, %v1531
    %v1620 = vpack.c.b16 %v1536, %v1532
    %v1621 = vpack.c.b16 %v1537, %v1533
    %v1622 = vpack.c.b16 %v1542, %v1538
    %v1623 = vpack.c.b16 %v1543, %v1539
    %v1624 = vpack.c.b16 %v1544, %v1540
    %v1625 = vpack.c.b16 %v1545, %v1541
    %v1626 = vpack.c.b16 %v1550, %v1546
    %v1627 = vpack.c.b16 %v1551, %v1547
    %v1628 = vpack.c.b16 %v1552, %v1548
    %v1629 = vpack.c.b16 %v1553, %v1549
    %v1630 = vpack.c.b16 %v1558, %v1554
    %v1631 = vpack.c.b16 %v1559, %v1555
    %v1632 = vpack.c.b16 %v1560, %v1556
    %v1633 = vpack.c.b16 %v1561, %v1557
    %v1634 = vpack.c.b16 %v1566, %v1562
    %v1635 = vpack.c.b16 %v1567, %v1563
    %v1636 = vpack.c.b16 %v1568, %v1564
    %v1637 = vpack.c.b16 %v1569, %v1565
    %v1638 = vpack.c.b16 %v1574, %v1570
    %v1639 = vpack.c.b16 %v1575, %v1571
    %v1640 = vpack.c.b16 %v1576, %v1572
    %v1641 = vpack.c.b16 %v1577, %v1573
    %1706 = vmatpush.bf16.msra.mxu0 %v1606
    %1707 = vmatpush.bf16.msra.mxu0 %v1602
    %1708 = vmatpush.bf16.msra.mxu0 %v1598
    %1709 = vmatpush.bf16.msra.mxu0 %v1594
    %1710 = vmatpush.bf16.msra.mxu0 %v1590
    %1711 = vmatpush.bf16.msra.mxu0 %v1586
    %1712 = vmatpush.bf16.msra.mxu0 %v1582
    %1713 = vmatpush.bf16.msra.mxu0 %v1578
    %1714 = vmatmul.bf16.gmra.mxu0 %v809
    %v1715 = vpop.f32.mrf.mxu0
    %v1716 = vadd.f32 %v1222, %v1715
    %v1717 = vpop.f32.mrf.mxu0
    %v1718 = vadd.f32 %v1224, %v1717
    %1719 = vmatmul.bf16.gmra.mxu0 %v811
    %v1720 = vpop.f32.mrf.mxu0
    %v1721 = vadd.f32 %v1227, %v1720
    %v1722 = vpop.f32.mrf.mxu0
    %v1723 = vadd.f32 %v1229, %v1722
    %1724 = vmatmul.bf16.gmra.mxu0 %v813
    %v1725 = vpop.f32.mrf.mxu0
    %v1726 = vadd.f32 %v1232, %v1725
    %v1727 = vpop.f32.mrf.mxu0
    %v1728 = vadd.f32 %v1234, %v1727
    %1729 = vdwg.mxu0
    %1730 = vmatpush.bf16.msra.mxu0 %v1638
    %1731 = vmatpush.bf16.msra.mxu0 %v1634
    %1732 = vmatpush.bf16.msra.mxu0 %v1630
    %1733 = vmatpush.bf16.msra.mxu0 %v1626
    %1734 = vmatpush.bf16.msra.mxu0 %v1622
    %1735 = vmatpush.bf16.msra.mxu0 %v1618
    %1736 = vmatpush.bf16.msra.mxu0 %v1614
    %1737 = vmatpush.bf16.msra.mxu0 %v1610
    %1738 = vmatmul.bf16.gmra.mxu0 %v810
    %v1739 = vpop.f32.mrf.mxu0
    %v1740 = vadd.f32 %v1716, %v1739
    %v1741 = vpop.f32.mrf.mxu0
    %v1742 = vadd.f32 %v1718, %v1741
    %1743 = vmatmul.bf16.gmra.mxu0 %v812
    %v1744 = vpop.f32.mrf.mxu0
    %v1745 = vadd.f32 %v1721, %v1744
    %v1746 = vpop.f32.mrf.mxu0
    %v1747 = vadd.f32 %v1723, %v1746
    %1748 = vmatmul.bf16.gmra.mxu0 %v814
    %v1749 = vpop.f32.mrf.mxu0
    %v1750 = vadd.f32 %v1726, %v1749
    %v1751 = vpop.f32.mrf.mxu0
    %v1752 = vadd.f32 %v1728, %v1751
    %1753 = vdwg.mxu0
    %1754 = vmatpush.bf16.msra.mxu0 %v1607
    %1755 = vmatpush.bf16.msra.mxu0 %v1603
    %1756 = vmatpush.bf16.msra.mxu0 %v1599
    %1757 = vmatpush.bf16.msra.mxu0 %v1595
    %1758 = vmatpush.bf16.msra.mxu0 %v1591
    %1759 = vmatpush.bf16.msra.mxu0 %v1587
    %1760 = vmatpush.bf16.msra.mxu0 %v1583
    %1761 = vmatpush.bf16.msra.mxu0 %v1579
    %1762 = vmatmul.bf16.gmra.mxu0 %v809
    %v1763 = vpop.f32.mrf.mxu0
    %v1764 = vadd.f32 %v1270, %v1763
    %v1765 = vpop.f32.mrf.mxu0
    %v1766 = vadd.f32 %v1272, %v1765
    %1767 = vmatmul.bf16.gmra.mxu0 %v811
    %v1768 = vpop.f32.mrf.mxu0
    %v1769 = vadd.f32 %v1275, %v1768
    %v1770 = vpop.f32.mrf.mxu0
    %v1771 = vadd.f32 %v1277, %v1770
    %1772 = vmatmul.bf16.gmra.mxu0 %v813
    %v1773 = vpop.f32.mrf.mxu0
    %v1774 = vadd.f32 %v1280, %v1773
    %v1775 = vpop.f32.mrf.mxu0
    %v1776 = vadd.f32 %v1282, %v1775
    %1777 = vdwg.mxu0
    %1778 = vmatpush.bf16.msra.mxu0 %v1639
    %1779 = vmatpush.bf16.msra.mxu0 %v1635
    %1780 = vmatpush.bf16.msra.mxu0 %v1631
    %1781 = vmatpush.bf16.msra.mxu0 %v1627
    %1782 = vmatpush.bf16.msra.mxu0 %v1623
    %1783 = vmatpush.bf16.msra.mxu0 %v1619
    %1784 = vmatpush.bf16.msra.mxu0 %v1615
    %1785 = vmatpush.bf16.msra.mxu0 %v1611
    %1786 = vmatmul.bf16.gmra.mxu0 %v810
    %v1787 = vpop.f32.mrf.mxu0
    %v1788 = vadd.f32 %v1764, %v1787
    %v1789 = vpop.f32.mrf.mxu0
    %v1790 = vadd.f32 %v1766, %v1789
    %1791 = vmatmul.bf16.gmra.mxu0 %v812
    %v1792 = vpop.f32.mrf.mxu0
    %v1793 = vadd.f32 %v1769, %v1792
    %v1794 = vpop.f32.mrf.mxu0
    %v1795 = vadd.f32 %v1771, %v1794
    %1796 = vmatmul.bf16.gmra.mxu0 %v814
    %v1797 = vpop.f32.mrf.mxu0
    %v1798 = vadd.f32 %v1774, %v1797
    %v1799 = vpop.f32.mrf.mxu0
    %v1800 = vadd.f32 %v1776, %v1799
    %1801 = vdwg.mxu0
    %1802 = vmatpush.bf16.msra.mxu0 %v1608
    %1803 = vmatpush.bf16.msra.mxu0 %v1604
    %1804 = vmatpush.bf16.msra.mxu0 %v1600
    %1805 = vmatpush.bf16.msra.mxu0 %v1596
    %1806 = vmatpush.bf16.msra.mxu0 %v1592
    %1807 = vmatpush.bf16.msra.mxu0 %v1588
    %1808 = vmatpush.bf16.msra.mxu0 %v1584
    %1809 = vmatpush.bf16.msra.mxu0 %v1580
    %1810 = vmatmul.bf16.gmra.mxu0 %v809
    %v1811 = vpop.f32.mrf.mxu0
    %v1812 = vadd.f32 %v1318, %v1811
    %v1813 = vpop.f32.mrf.mxu0
    %v1814 = vadd.f32 %v1320, %v1813
    %1815 = vmatmul.bf16.gmra.mxu0 %v811
    %v1816 = vpop.f32.mrf.mxu0
    %v1817 = vadd.f32 %v1323, %v1816
    %v1818 = vpop.f32.mrf.mxu0
    %v1819 = vadd.f32 %v1325, %v1818
    %1820 = vmatmul.bf16.gmra.mxu0 %v813
    %v1821 = vpop.f32.mrf.mxu0
    %v1822 = vadd.f32 %v1328, %v1821
    %v1823 = vpop.f32.mrf.mxu0
    %v1824 = vadd.f32 %v1330, %v1823
    %1825 = vdwg.mxu0
    %1826 = vmatpush.bf16.msra.mxu0 %v1640
    %1827 = vmatpush.bf16.msra.mxu0 %v1636
    %1828 = vmatpush.bf16.msra.mxu0 %v1632
    %1829 = vmatpush.bf16.msra.mxu0 %v1628
    %1830 = vmatpush.bf16.msra.mxu0 %v1624
    %1831 = vmatpush.bf16.msra.mxu0 %v1620
    %1832 = vmatpush.bf16.msra.mxu0 %v1616
    %1833 = vmatpush.bf16.msra.mxu0 %v1612
    %1834 = vmatmul.bf16.gmra.mxu0 %v810
    %v1835 = vpop.f32.mrf.mxu0
    %v1836 = vadd.f32 %v1812, %v1835
    %v1837 = vpop.f32.mrf.mxu0
    %v1838 = vadd.f32 %v1814, %v1837
    %1839 = vmatmul.bf16.gmra.mxu0 %v812
    %v1840 = vpop.f32.mrf.mxu0
    %v1841 = vadd.f32 %v1817, %v1840
    %v1842 = vpop.f32.mrf.mxu0
    %v1843 = vadd.f32 %v1819, %v1842
    %1844 = vmatmul.bf16.gmra.mxu0 %v814
    %v1845 = vpop.f32.mrf.mxu0
    %v1846 = vadd.f32 %v1822, %v1845
    %v1847 = vpop.f32.mrf.mxu0
    %v1848 = vadd.f32 %v1824, %v1847
    %1849 = vdwg.mxu0
    %1850 = vmatpush.bf16.msra.mxu0 %v1609
    %1851 = vmatpush.bf16.msra.mxu0 %v1605
    %1852 = vmatpush.bf16.msra.mxu0 %v1601
    %1853 = vmatpush.bf16.msra.mxu0 %v1597
    %1854 = vmatpush.bf16.msra.mxu0 %v1593
    %1855 = vmatpush.bf16.msra.mxu0 %v1589
    %1856 = vmatpush.bf16.msra.mxu0 %v1585
    %1857 = vmatpush.bf16.msra.mxu0 %v1581
    %1858 = vmatmul.bf16.gmra.mxu0 %v809
    %v1859 = vpop.f32.mrf.mxu0
    %v1860 = vadd.f32 %v1366, %v1859
    %v1861 = vpop.f32.mrf.mxu0
    %v1862 = vadd.f32 %v1368, %v1861
    %1863 = vmatmul.bf16.gmra.mxu0 %v811
    %v1864 = vpop.f32.mrf.mxu0
    %v1865 = vadd.f32 %v1371, %v1864
    %v1866 = vpop.f32.mrf.mxu0
    %v1867 = vadd.f32 %v1373, %v1866
    %1868 = vmatmul.bf16.gmra.mxu0 %v813
    %v1869 = vpop.f32.mrf.mxu0
    %v1870 = vadd.f32 %v1376, %v1869
    %v1871 = vpop.f32.mrf.mxu0
    %v1872 = vadd.f32 %v1378, %v1871
    %1873 = vdwg.mxu0
    %1874 = vmatpush.bf16.msra.mxu0 %v1641
    %1875 = vmatpush.bf16.msra.mxu0 %v1637
    %1876 = vmatpush.bf16.msra.mxu0 %v1633
    %1877 = vmatpush.bf16.msra.mxu0 %v1629
    %1878 = vmatpush.bf16.msra.mxu0 %v1625
    %1879 = vmatpush.bf16.msra.mxu0 %v1621
    %1880 = vmatpush.bf16.msra.mxu0 %v1617
    %1881 = vmatpush.bf16.msra.mxu0 %v1613
    %1882 = vmatmul.bf16.gmra.mxu0 %v810
    %v1883 = vpop.f32.mrf.mxu0
    %v1884 = vadd.f32 %v1860, %v1883
    %v1885 = vpop.f32.mrf.mxu0
    %v1886 = vadd.f32 %v1862, %v1885
    %1887 = vmatmul.bf16.gmra.mxu0 %v812
    %v1888 = vpop.f32.mrf.mxu0
    %v1889 = vadd.f32 %v1865, %v1888
    %v1890 = vpop.f32.mrf.mxu0
    %v1891 = vadd.f32 %v1867, %v1890
    %1892 = vmatmul.bf16.gmra.mxu0 %v814
    %v1893 = vpop.f32.mrf.mxu0
    %v1894 = vadd.f32 %v1870, %v1893
    %v1895 = vpop.f32.mrf.mxu0
    %v1896 = vadd.f32 %v1872, %v1895
    %1897 = vdwg.mxu0
    %s1898 = scalar_lea.vmem [#allocation9], 1024
    %v1899 = vld [vmem:[%s1898] sm:$0xff]
    %v1900 = vld [vmem:[%s1898 + $0x8] sm:$0xff]
    %v1901 = vld [vmem:[%s1898 + $0x10] sm:$0xff]
    %v1902 = vld [vmem:[%s1898 + $0x18] sm:$0xff]
    %v1903 = vld [vmem:[%s1898 + $0x20] sm:$0xff]
    %v1904 = vld [vmem:[%s1898 + $0x28] sm:$0xff]
    %v1905 = vld [vmem:[%s1898 + $0x30] sm:$0xff]
    %v1906 = vld [vmem:[%s1898 + $0x38] sm:$0xff]
    %v1907 = vld [vmem:[%s1898 + $0x40] sm:$0xff]
    %v1908 = vld [vmem:[%s1898 + $0x48] sm:$0xff]
    %v1909 = vld [vmem:[%s1898 + $0x50] sm:$0xff]
    %v1910 = vld [vmem:[%s1898 + $0x58] sm:$0xff]
    %v1911 = vld [vmem:[%s1898 + $0x60] sm:$0xff]
    %v1912 = vld [vmem:[%s1898 + $0x68] sm:$0xff]
    %v1913 = vld [vmem:[%s1898 + $0x70] sm:$0xff]
    %v1914 = vld [vmem:[%s1898 + $0x78] sm:$0xff]
    %v1915 = vld [vmem:[%s1898 + $0x80] sm:$0xff]
    %v1916 = vld [vmem:[%s1898 + $0x88] sm:$0xff]
    %v1917 = vld [vmem:[%s1898 + $0x90] sm:$0xff]
    %v1918 = vld [vmem:[%s1898 + $0x98] sm:$0xff]
    %v1919 = vld [vmem:[%s1898 + $0xa0] sm:$0xff]
    %v1920 = vld [vmem:[%s1898 + $0xa8] sm:$0xff]
    %v1921 = vld [vmem:[%s1898 + $0xb0] sm:$0xff]
    %v1922 = vld [vmem:[%s1898 + $0xb8] sm:$0xff]
    %v1923 = vld [vmem:[%s1898 + $0xc0] sm:$0xff]
    %v1924 = vld [vmem:[%s1898 + $0xc8] sm:$0xff]
    %v1925 = vld [vmem:[%s1898 + $0xd0] sm:$0xff]
    %v1926 = vld [vmem:[%s1898 + $0xd8] sm:$0xff]
    %v1927 = vld [vmem:[%s1898 + $0xe0] sm:$0xff]
    %v1928 = vld [vmem:[%s1898 + $0xe8] sm:$0xff]
    %v1929 = vld [vmem:[%s1898 + $0xf0] sm:$0xff]
    %v1930 = vld [vmem:[%s1898 + $0xf8] sm:$0xff]
    %v1931 = vld [vmem:[%s1898 + $0x100] sm:$0xff]
    %v1932 = vld [vmem:[%s1898 + $0x108] sm:$0xff]
    %v1933 = vld [vmem:[%s1898 + $0x110] sm:$0xff]
    %v1934 = vld [vmem:[%s1898 + $0x118] sm:$0xff]
    %v1935 = vld [vmem:[%s1898 + $0x120] sm:$0xff]
    %v1936 = vld [vmem:[%s1898 + $0x128] sm:$0xff]
    %v1937 = vld [vmem:[%s1898 + $0x130] sm:$0xff]
    %v1938 = vld [vmem:[%s1898 + $0x138] sm:$0xff]
    %v1939 = vld [vmem:[%s1898 + $0x140] sm:$0xff]
    %v1940 = vld [vmem:[%s1898 + $0x148] sm:$0xff]
    %v1941 = vld [vmem:[%s1898 + $0x150] sm:$0xff]
    %v1942 = vld [vmem:[%s1898 + $0x158] sm:$0xff]
    %v1943 = vld [vmem:[%s1898 + $0x160] sm:$0xff]
    %v1944 = vld [vmem:[%s1898 + $0x168] sm:$0xff]
    %v1945 = vld [vmem:[%s1898 + $0x170] sm:$0xff]
    %v1946 = vld [vmem:[%s1898 + $0x178] sm:$0xff]
    %v1947 = vld [vmem:[%s1898 + $0x180] sm:$0xff]
    %v1948 = vld [vmem:[%s1898 + $0x188] sm:$0xff]
    %v1949 = vld [vmem:[%s1898 + $0x190] sm:$0xff]
    %v1950 = vld [vmem:[%s1898 + $0x198] sm:$0xff]
    %v1951 = vld [vmem:[%s1898 + $0x1a0] sm:$0xff]
    %v1952 = vld [vmem:[%s1898 + $0x1a8] sm:$0xff]
    %v1953 = vld [vmem:[%s1898 + $0x1b0] sm:$0xff]
    %v1954 = vld [vmem:[%s1898 + $0x1b8] sm:$0xff]
    %v1955 = vld [vmem:[%s1898 + $0x1c0] sm:$0xff]
    %v1956 = vld [vmem:[%s1898 + $0x1c8] sm:$0xff]
    %v1957 = vld [vmem:[%s1898 + $0x1d0] sm:$0xff]
    %v1958 = vld [vmem:[%s1898 + $0x1d8] sm:$0xff]
    %v1959 = vld [vmem:[%s1898 + $0x1e0] sm:$0xff]
    %v1960 = vld [vmem:[%s1898 + $0x1e8] sm:$0xff]
    %v1961 = vld [vmem:[%s1898 + $0x1f0] sm:$0xff]
    %v1962 = vld [vmem:[%s1898 + $0x1f8] sm:$0xff]
    %vm1963 = vcmask 1046528
    %v1964 = vrot.slane %v809, 1
    %v1965 = vrot.slane %v811, 1
    %v1966 = vsel %vm1963, %v1964, %v1965
    %v1967 = vrot.slane %v810, 1
    %v1968 = vrot.slane %v812, 1
    %v1969 = vsel %vm1963, %v1967, %v1968
    %v1970 = vrot.slane %v813, 1
    %v1971 = vsel %vm1963, %v1965, %v1970
    %v1972 = vrot.slane %v814, 1
    %v1973 = vsel %vm1963, %v1968, %v1972
    %v2044 = vunpack.c.l.b16 %v1899
    %v2045 = vunpack.c.h.b16 %v1899
    %v2046 = vunpack.c.l.b16 %v1900
    %v2047 = vunpack.c.h.b16 %v1900
    %v2048 = vunpack.c.l.b16 %v1901
    %v2049 = vunpack.c.h.b16 %v1901
    %v2050 = vunpack.c.l.b16 %v1902
    %v2051 = vunpack.c.h.b16 %v1902
    %v2052 = vunpack.c.l.b16 %v1903
    %v2053 = vunpack.c.h.b16 %v1903
    %v2054 = vunpack.c.l.b16 %v1904
    %v2055 = vunpack.c.h.b16 %v1904
    %v2056 = vunpack.c.l.b16 %v1905
    %v2057 = vunpack.c.h.b16 %v1905
    %v2058 = vunpack.c.l.b16 %v1906
    %v2059 = vunpack.c.h.b16 %v1906
    %v2060 = vunpack.c.l.b16 %v1907
    %v2061 = vunpack.c.h.b16 %v1907
    %v2062 = vunpack.c.l.b16 %v1908
    %v2063 = vunpack.c.h.b16 %v1908
    %v2064 = vunpack.c.l.b16 %v1909
    %v2065 = vunpack.c.h.b16 %v1909
    %v2066 = vunpack.c.l.b16 %v1910
    %v2067 = vunpack.c.h.b16 %v1910
    %v2068 = vunpack.c.l.b16 %v1911
    %v2069 = vunpack.c.h.b16 %v1911
    %v2070 = vunpack.c.l.b16 %v1912
    %v2071 = vunpack.c.h.b16 %v1912
    %v2072 = vunpack.c.l.b16 %v1913
    %v2073 = vunpack.c.h.b16 %v1913
    %v2074 = vunpack.c.l.b16 %v1914
    %v2075 = vunpack.c.h.b16 %v1914
    %v2076 = vunpack.c.l.b16 %v1915
    %v2077 = vunpack.c.h.b16 %v1915
    %v2078 = vunpack.c.l.b16 %v1916
    %v2079 = vunpack.c.h.b16 %v1916
    %v2080 = vunpack.c.l.b16 %v1917
    %v2081 = vunpack.c.h.b16 %v1917
    %v2082 = vunpack.c.l.b16 %v1918
    %v2083 = vunpack.c.h.b16 %v1918
    %v2084 = vunpack.c.l.b16 %v1919
    %v2085 = vunpack.c.h.b16 %v1919
    %v2086 = vunpack.c.l.b16 %v1920
    %v2087 = vunpack.c.h.b16 %v1920
    %v2088 = vunpack.c.l.b16 %v1921
    %v2089 = vunpack.c.h.b16 %v1921
    %v2090 = vunpack.c.l.b16 %v1922
    %v2091 = vunpack.c.h.b16 %v1922
    %v2092 = vunpack.c.l.b16 %v1923
    %v2093 = vunpack.c.h.b16 %v1923
    %v2094 = vunpack.c.l.b16 %v1924
    %v2095 = vunpack.c.h.b16 %v1924
    %v2096 = vunpack.c.l.b16 %v1925
    %v2097 = vunpack.c.h.b16 %v1925
    %v2098 = vunpack.c.l.b16 %v1926
    %v2099 = vunpack.c.h.b16 %v1926
    %v2100 = vunpack.c.l.b16 %v1927
    %v2101 = vunpack.c.h.b16 %v1927
    %v2102 = vunpack.c.l.b16 %v1928
    %v2103 = vunpack.c.h.b16 %v1928
    %v2104 = vunpack.c.l.b16 %v1929
    %v2105 = vunpack.c.h.b16 %v1929
    %v2106 = vunpack.c.l.b16 %v1930
    %v2107 = vunpack.c.h.b16 %v1930
    %v2108 = vunpack.c.l.b16 %v1931
    %v2109 = vunpack.c.h.b16 %v1931
    %v2110 = vunpack.c.l.b16 %v1932
    %v2111 = vunpack.c.h.b16 %v1932
    %v2112 = vunpack.c.l.b16 %v1933
    %v2113 = vunpack.c.h.b16 %v1933
    %v2114 = vunpack.c.l.b16 %v1934
    %v2115 = vunpack.c.h.b16 %v1934
    %v2116 = vunpack.c.l.b16 %v1935
    %v2117 = vunpack.c.h.b16 %v1935
    %v2118 = vunpack.c.l.b16 %v1936
    %v2119 = vunpack.c.h.b16 %v1936
    %v2120 = vunpack.c.l.b16 %v1937
    %v2121 = vunpack.c.h.b16 %v1937
    %v2122 = vunpack.c.l.b16 %v1938
    %v2123 = vunpack.c.h.b16 %v1938
    %v2124 = vunpack.c.l.b16 %v1939
    %v2125 = vunpack.c.h.b16 %v1939
    %v2126 = vunpack.c.l.b16 %v1940
    %v2127 = vunpack.c.h.b16 %v1940
    %v2128 = vunpack.c.l.b16 %v1941
    %v2129 = vunpack.c.h.b16 %v1941
    %v2130 = vunpack.c.l.b16 %v1942
    %v2131 = vunpack.c.h.b16 %v1942
    %v2132 = vunpack.c.l.b16 %v1943
    %v2133 = vunpack.c.h.b16 %v1943
    %v2134 = vunpack.c.l.b16 %v1944
    %v2135 = vunpack.c.h.b16 %v1944
    %v2136 = vunpack.c.l.b16 %v1945
    %v2137 = vunpack.c.h.b16 %v1945
    %v2138 = vunpack.c.l.b16 %v1946
    %v2139 = vunpack.c.h.b16 %v1946
    %v2140 = vunpack.c.l.b16 %v1947
    %v2141 = vunpack.c.h.b16 %v1947
    %v2142 = vunpack.c.l.b16 %v1948
    %v2143 = vunpack.c.h.b16 %v1948
    %v2144 = vunpack.c.l.b16 %v1949
    %v2145 = vunpack.c.h.b16 %v1949
    %v2146 = vunpack.c.l.b16 %v1950
    %v2147 = vunpack.c.h.b16 %v1950
    %v2148 = vunpack.c.l.b16 %v1951
    %v2149 = vunpack.c.h.b16 %v1951
    %v2150 = vunpack.c.l.b16 %v1952
    %v2151 = vunpack.c.h.b16 %v1952
    %v2152 = vunpack.c.l.b16 %v1953
    %v2153 = vunpack.c.h.b16 %v1953
    %v2154 = vunpack.c.l.b16 %v1954
    %v2155 = vunpack.c.h.b16 %v1954
    %v2156 = vunpack.c.l.b16 %v1955
    %v2157 = vunpack.c.h.b16 %v1955
    %v2158 = vunpack.c.l.b16 %v1956
    %v2159 = vunpack.c.h.b16 %v1956
    %v2160 = vunpack.c.l.b16 %v1957
    %v2161 = vunpack.c.h.b16 %v1957
    %v2162 = vunpack.c.l.b16 %v1958
    %v2163 = vunpack.c.h.b16 %v1958
    %v2164 = vunpack.c.l.b16 %v1959
    %v2165 = vunpack.c.h.b16 %v1959
    %v2166 = vunpack.c.l.b16 %v1960
    %v2167 = vunpack.c.h.b16 %v1960
    %v2168 = vunpack.c.l.b16 %v1961
    %v2169 = vunpack.c.h.b16 %v1961
    %v2170 = vunpack.c.l.b16 %v1962
    %v2171 = vunpack.c.h.b16 %v1962
    %v2172 = vpack.c.b16 %v2048, %v2044
    %v2173 = vpack.c.b16 %v2049, %v2045
    %v2174 = vpack.c.b16 %v2050, %v2046
    %v2175 = vpack.c.b16 %v2051, %v2047
    %v2176 = vpack.c.b16 %v2056, %v2052
    %v2177 = vpack.c.b16 %v2057, %v2053
    %v2178 = vpack.c.b16 %v2058, %v2054
    %v2179 = vpack.c.b16 %v2059, %v2055
    %v2180 = vpack.c.b16 %v2064, %v2060
    %v2181 = vpack.c.b16 %v2065, %v2061
    %v2182 = vpack.c.b16 %v2066, %v2062
    %v2183 = vpack.c.b16 %v2067, %v2063
    %v2184 = vpack.c.b16 %v2072, %v2068
    %v2185 = vpack.c.b16 %v2073, %v2069
    %v2186 = vpack.c.b16 %v2074, %v2070
    %v2187 = vpack.c.b16 %v2075, %v2071
    %v2188 = vpack.c.b16 %v2080, %v2076
    %v2189 = vpack.c.b16 %v2081, %v2077
    %v2190 = vpack.c.b16 %v2082, %v2078
    %v2191 = vpack.c.b16 %v2083, %v2079
    %v2192 = vpack.c.b16 %v2088, %v2084
    %v2193 = vpack.c.b16 %v2089, %v2085
    %v2194 = vpack.c.b16 %v2090, %v2086
    %v2195 = vpack.c.b16 %v2091, %v2087
    %v2196 = vpack.c.b16 %v2096, %v2092
    %v2197 = vpack.c.b16 %v2097, %v2093
    %v2198 = vpack.c.b16 %v2098, %v2094
    %v2199 = vpack.c.b16 %v2099, %v2095
    %v2200 = vpack.c.b16 %v2104, %v2100
    %v2201 = vpack.c.b16 %v2105, %v2101
    %v2202 = vpack.c.b16 %v2106, %v2102
    %v2203 = vpack.c.b16 %v2107, %v2103
    %v2204 = vpack.c.b16 %v2112, %v2108
    %v2205 = vpack.c.b16 %v2113, %v2109
    %v2206 = vpack.c.b16 %v2114, %v2110
    %v2207 = vpack.c.b16 %v2115, %v2111
    %v2208 = vpack.c.b16 %v2120, %v2116
    %v2209 = vpack.c.b16 %v2121, %v2117
    %v2210 = vpack.c.b16 %v2122, %v2118
    %v2211 = vpack.c.b16 %v2123, %v2119
    %v2212 = vpack.c.b16 %v2128, %v2124
    %v2213 = vpack.c.b16 %v2129, %v2125
    %v2214 = vpack.c.b16 %v2130, %v2126
    %v2215 = vpack.c.b16 %v2131, %v2127
    %v2216 = vpack.c.b16 %v2136, %v2132
    %v2217 = vpack.c.b16 %v2137, %v2133
    %v2218 = vpack.c.b16 %v2138, %v2134
    %v2219 = vpack.c.b16 %v2139, %v2135
    %v2220 = vpack.c.b16 %v2144, %v2140
    %v2221 = vpack.c.b16 %v2145, %v2141
    %v2222 = vpack.c.b16 %v2146, %v2142
    %v2223 = vpack.c.b16 %v2147, %v2143
    %v2224 = vpack.c.b16 %v2152, %v2148
    %v2225 = vpack.c.b16 %v2153, %v2149
    %v2226 = vpack.c.b16 %v2154, %v2150
    %v2227 = vpack.c.b16 %v2155, %v2151
    %v2228 = vpack.c.b16 %v2160, %v2156
    %v2229 = vpack.c.b16 %v2161, %v2157
    %v2230 = vpack.c.b16 %v2162, %v2158
    %v2231 = vpack.c.b16 %v2163, %v2159
    %v2232 = vpack.c.b16 %v2168, %v2164
    %v2233 = vpack.c.b16 %v2169, %v2165
    %v2234 = vpack.c.b16 %v2170, %v2166
    %v2235 = vpack.c.b16 %v2171, %v2167
    %2300 = vmatpush.bf16.msra.mxu0 %v2200
    %2301 = vmatpush.bf16.msra.mxu0 %v2196
    %2302 = vmatpush.bf16.msra.mxu0 %v2192
    %2303 = vmatpush.bf16.msra.mxu0 %v2188
    %2304 = vmatpush.bf16.msra.mxu0 %v2184
    %2305 = vmatpush.bf16.msra.mxu0 %v2180
    %2306 = vmatpush.bf16.msra.mxu0 %v2176
    %2307 = vmatpush.bf16.msra.mxu0 %v2172
    %2308 = vmatmul.bf16.gmra.mxu0 %v1966
    %v2309 = vpop.f32.mrf.mxu0
    %v2310 = vadd.f32 0.0, %v2309
    %v2311 = vpop.f32.mrf.mxu0
    %v2312 = vadd.f32 0.0, %v2311
    %2313 = vmatmul.bf16.gmra.mxu0 %v1971
    %v2314 = vpop.f32.mrf.mxu0
    %v2315 = vadd.f32 0.0, %v2314
    %v2316 = vpop.f32.mrf.mxu0
    %v2317 = vadd.f32 0.0, %v2316
    %2318 = vmatmul.bf16.gmra.mxu0 %v1970
    %v2319 = vpop.f32.mrf.mxu0
    %v2320 = vadd.f32 0.0, %v2319
    %v2321 = vpop.f32.mrf.mxu0
    %v2322 = vadd.f32 0.0, %v2321
    %2323 = vdwg.mxu0
    %2324 = vmatpush.bf16.msra.mxu0 %v2232
    %2325 = vmatpush.bf16.msra.mxu0 %v2228
    %2326 = vmatpush.bf16.msra.mxu0 %v2224
    %2327 = vmatpush.bf16.msra.mxu0 %v2220
    %2328 = vmatpush.bf16.msra.mxu0 %v2216
    %2329 = vmatpush.bf16.msra.mxu0 %v2212
    %2330 = vmatpush.bf16.msra.mxu0 %v2208
    %2331 = vmatpush.bf16.msra.mxu0 %v2204
    %2332 = vmatmul.bf16.gmra.mxu0 %v1969
    %v2333 = vpop.f32.mrf.mxu0
    %v2334 = vadd.f32 %v2310, %v2333
    %v2335 = vpop.f32.mrf.mxu0
    %v2336 = vadd.f32 %v2312, %v2335
    %2337 = vmatmul.bf16.gmra.mxu0 %v1973
    %v2338 = vpop.f32.mrf.mxu0
    %v2339 = vadd.f32 %v2315, %v2338
    %v2340 = vpop.f32.mrf.mxu0
    %v2341 = vadd.f32 %v2317, %v2340
    %2342 = vmatmul.bf16.gmra.mxu0 %v1972
    %v2343 = vpop.f32.mrf.mxu0
    %v2344 = vadd.f32 %v2320, %v2343
    %v2345 = vpop.f32.mrf.mxu0
    %v2346 = vadd.f32 %v2322, %v2345
    %2347 = vdwg.mxu0
    %2348 = vmatpush.bf16.msra.mxu0 %v2201
    %2349 = vmatpush.bf16.msra.mxu0 %v2197
    %2350 = vmatpush.bf16.msra.mxu0 %v2193
    %2351 = vmatpush.bf16.msra.mxu0 %v2189
    %2352 = vmatpush.bf16.msra.mxu0 %v2185
    %2353 = vmatpush.bf16.msra.mxu0 %v2181
    %2354 = vmatpush.bf16.msra.mxu0 %v2177
    %2355 = vmatpush.bf16.msra.mxu0 %v2173
    %2356 = vmatmul.bf16.gmra.mxu0 %v1966
    %v2357 = vpop.f32.mrf.mxu0
    %v2358 = vadd.f32 0.0, %v2357
    %v2359 = vpop.f32.mrf.mxu0
    %v2360 = vadd.f32 0.0, %v2359
    %2361 = vmatmul.bf16.gmra.mxu0 %v1971
    %v2362 = vpop.f32.mrf.mxu0
    %v2363 = vadd.f32 0.0, %v2362
    %v2364 = vpop.f32.mrf.mxu0
    %v2365 = vadd.f32 0.0, %v2364
    %2366 = vmatmul.bf16.gmra.mxu0 %v1970
    %v2367 = vpop.f32.mrf.mxu0
    %v2368 = vadd.f32 0.0, %v2367
    %v2369 = vpop.f32.mrf.mxu0
    %v2370 = vadd.f32 0.0, %v2369
    %2371 = vdwg.mxu0
    %2372 = vmatpush.bf16.msra.mxu0 %v2233
    %2373 = vmatpush.bf16.msra.mxu0 %v2229
    %2374 = vmatpush.bf16.msra.mxu0 %v2225
    %2375 = vmatpush.bf16.msra.mxu0 %v2221
    %2376 = vmatpush.bf16.msra.mxu0 %v2217
    %2377 = vmatpush.bf16.msra.mxu0 %v2213
    %2378 = vmatpush.bf16.msra.mxu0 %v2209
    %2379 = vmatpush.bf16.msra.mxu0 %v2205
    %2380 = vmatmul.bf16.gmra.mxu0 %v1969
    %v2381 = vpop.f32.mrf.mxu0
    %v2382 = vadd.f32 %v2358, %v2381
    %v2383 = vpop.f32.mrf.mxu0
    %v2384 = vadd.f32 %v2360, %v2383
    %2385 = vmatmul.bf16.gmra.mxu0 %v1973
    %v2386 = vpop.f32.mrf.mxu0
    %v2387 = vadd.f32 %v2363, %v2386
    %v2388 = vpop.f32.mrf.mxu0
    %v2389 = vadd.f32 %v2365, %v2388
    %2390 = vmatmul.bf16.gmra.mxu0 %v1972
    %v2391 = vpop.f32.mrf.mxu0
    %v2392 = vadd.f32 %v2368, %v2391
    %v2393 = vpop.f32.mrf.mxu0
    %v2394 = vadd.f32 %v2370, %v2393
    %2395 = vdwg.mxu0
    %2396 = vmatpush.bf16.msra.mxu0 %v2202
    %2397 = vmatpush.bf16.msra.mxu0 %v2198
    %2398 = vmatpush.bf16.msra.mxu0 %v2194
    %2399 = vmatpush.bf16.msra.mxu0 %v2190
    %2400 = vmatpush.bf16.msra.mxu0 %v2186
    %2401 = vmatpush.bf16.msra.mxu0 %v2182
    %2402 = vmatpush.bf16.msra.mxu0 %v2178
    %2403 = vmatpush.bf16.msra.mxu0 %v2174
    %2404 = vmatmul.bf16.gmra.mxu0 %v1966
    %v2405 = vpop.f32.mrf.mxu0
    %v2406 = vadd.f32 0.0, %v2405
    %v2407 = vpop.f32.mrf.mxu0
    %v2408 = vadd.f32 0.0, %v2407
    %2409 = vmatmul.bf16.gmra.mxu0 %v1971
    %v2410 = vpop.f32.mrf.mxu0
    %v2411 = vadd.f32 0.0, %v2410
    %v2412 = vpop.f32.mrf.mxu0
    %v2413 = vadd.f32 0.0, %v2412
    %2414 = vmatmul.bf16.gmra.mxu0 %v1970
    %v2415 = vpop.f32.mrf.mxu0
    %v2416 = vadd.f32 0.0, %v2415
    %v2417 = vpop.f32.mrf.mxu0
    %v2418 = vadd.f32 0.0, %v2417
    %2419 = vdwg.mxu0
    %2420 = vmatpush.bf16.msra.mxu0 %v2234
    %2421 = vmatpush.bf16.msra.mxu0 %v2230
    %2422 = vmatpush.bf16.msra.mxu0 %v2226
    %2423 = vmatpush.bf16.msra.mxu0 %v2222
    %2424 = vmatpush.bf16.msra.mxu0 %v2218
    %2425 = vmatpush.bf16.msra.mxu0 %v2214
    %2426 = vmatpush.bf16.msra.mxu0 %v2210
    %2427 = vmatpush.bf16.msra.mxu0 %v2206
    %2428 = vmatmul.bf16.gmra.mxu0 %v1969
    %v2429 = vpop.f32.mrf.mxu0
    %v2430 = vadd.f32 %v2406, %v2429
    %v2431 = vpop.f32.mrf.mxu0
    %v2432 = vadd.f32 %v2408, %v2431
    %2433 = vmatmul.bf16.gmra.mxu0 %v1973
    %v2434 = vpop.f32.mrf.mxu0
    %v2435 = vadd.f32 %v2411, %v2434
    %v2436 = vpop.f32.mrf.mxu0
    %v2437 = vadd.f32 %v2413, %v2436
    %2438 = vmatmul.bf16.gmra.mxu0 %v1972
    %v2439 = vpop.f32.mrf.mxu0
    %v2440 = vadd.f32 %v2416, %v2439
    %v2441 = vpop.f32.mrf.mxu0
    %v2442 = vadd.f32 %v2418, %v2441
    %2443 = vdwg.mxu0
    %2444 = vmatpush.bf16.msra.mxu0 %v2203
    %2445 = vmatpush.bf16.msra.mxu0 %v2199
    %2446 = vmatpush.bf16.msra.mxu0 %v2195
    %2447 = vmatpush.bf16.msra.mxu0 %v2191
    %2448 = vmatpush.bf16.msra.mxu0 %v2187
    %2449 = vmatpush.bf16.msra.mxu0 %v2183
    %2450 = vmatpush.bf16.msra.mxu0 %v2179
    %2451 = vmatpush.bf16.msra.mxu0 %v2175
    %2452 = vmatmul.bf16.gmra.mxu0 %v1966
    %v2453 = vpop.f32.mrf.mxu0
    %v2454 = vadd.f32 0.0, %v2453
    %v2455 = vpop.f32.mrf.mxu0
    %v2456 = vadd.f32 0.0, %v2455
    %2457 = vmatmul.bf16.gmra.mxu0 %v1971
    %v2458 = vpop.f32.mrf.mxu0
    %v2459 = vadd.f32 0.0, %v2458
    %v2460 = vpop.f32.mrf.mxu0
    %v2461 = vadd.f32 0.0, %v2460
    %2462 = vmatmul.bf16.gmra.mxu0 %v1970
    %v2463 = vpop.f32.mrf.mxu0
    %v2464 = vadd.f32 0.0, %v2463
    %v2465 = vpop.f32.mrf.mxu0
    %v2466 = vadd.f32 0.0, %v2465
    %2467 = vdwg.mxu0
    %2468 = vmatpush.bf16.msra.mxu0 %v2235
    %2469 = vmatpush.bf16.msra.mxu0 %v2231
    %2470 = vmatpush.bf16.msra.mxu0 %v2227
    %2471 = vmatpush.bf16.msra.mxu0 %v2223
    %2472 = vmatpush.bf16.msra.mxu0 %v2219
    %2473 = vmatpush.bf16.msra.mxu0 %v2215
    %2474 = vmatpush.bf16.msra.mxu0 %v2211
    %2475 = vmatpush.bf16.msra.mxu0 %v2207
    %2476 = vmatmul.bf16.gmra.mxu0 %v1969
    %v2477 = vpop.f32.mrf.mxu0
    %v2478 = vadd.f32 %v2454, %v2477
    %v2479 = vpop.f32.mrf.mxu0
    %v2480 = vadd.f32 %v2456, %v2479
    %2481 = vmatmul.bf16.gmra.mxu0 %v1973
    %v2482 = vpop.f32.mrf.mxu0
    %v2483 = vadd.f32 %v2459, %v2482
    %v2484 = vpop.f32.mrf.mxu0
    %v2485 = vadd.f32 %v2461, %v2484
    %2486 = vmatmul.bf16.gmra.mxu0 %v1972
    %v2487 = vpop.f32.mrf.mxu0
    %v2488 = vadd.f32 %v2464, %v2487
    %v2489 = vpop.f32.mrf.mxu0
    %v2490 = vadd.f32 %v2466, %v2489
    %2491 = vdwg.mxu0
    %v2492 = vadd.f32 %v1740, %v2334
    %v2493 = vadd.f32 %v1788, %v2382
    %v2494 = vadd.f32 %v1836, %v2430
    %v2495 = vadd.f32 %v1884, %v2478
    %v2496 = vadd.f32 %v1742, %v2336
    %v2497 = vadd.f32 %v1790, %v2384
    %v2498 = vadd.f32 %v1838, %v2432
    %v2499 = vadd.f32 %v1886, %v2480
    %v2500 = vadd.f32 %v1745, %v2339
    %v2501 = vadd.f32 %v1793, %v2387
    %v2502 = vadd.f32 %v1841, %v2435
    %v2503 = vadd.f32 %v1889, %v2483
    %v2504 = vadd.f32 %v1747, %v2341
    %v2505 = vadd.f32 %v1795, %v2389
    %v2506 = vadd.f32 %v1843, %v2437
    %v2507 = vadd.f32 %v1891, %v2485
    %v2508 = vadd.f32 %v1750, %v2344
    %v2509 = vadd.f32 %v1798, %v2392
    %v2510 = vadd.f32 %v1846, %v2440
    %v2511 = vadd.f32 %v1894, %v2488
    %v2512 = vadd.f32 %v1752, %v2346
    %v2513 = vadd.f32 %v1800, %v2394
    %v2514 = vadd.f32 %v1848, %v2442
    %v2515 = vadd.f32 %v1896, %v2490
    %v2516 = vld [vmem:[%s7] sm:$0xf]
    %v2518 = vperm.slane %v2516, 0
    %v2519 = vperm.slane %v2516, 1
    %v2520 = vperm.slane %v2516, 2
    %v2521 = vperm.slane %v2516, 3
    %v2526 = vadd.f32 %v2492, %v2518
    %v2527 = vadd.f32 %v2493, %v2519
    %v2528 = vadd.f32 %v2494, %v2520
    %v2529 = vadd.f32 %v2495, %v2521
    %v2530 = vadd.f32 %v2496, %v2518
    %v2531 = vadd.f32 %v2497, %v2519
    %v2532 = vadd.f32 %v2498, %v2520
    %v2533 = vadd.f32 %v2499, %v2521
    %v2534 = vadd.f32 %v2500, %v2518
    %v2535 = vadd.f32 %v2501, %v2519
    %v2536 = vadd.f32 %v2502, %v2520
    %v2537 = vadd.f32 %v2503, %v2521
    %v2538 = vmax.f32 %v2526, 0.0
    %v2539 = vmax.f32 %v2527, 0.0
    %v2540 = vmax.f32 %v2528, 0.0
    %v2541 = vmax.f32 %v2529, 0.0
    %v2542 = vmax.f32 %v2530, 0.0
    %v2543 = vmax.f32 %v2531, 0.0
    %v2544 = vmax.f32 %v2532, 0.0
    %v2545 = vmax.f32 %v2533, 0.0
    %v2546 = vmax.f32 %v2534, 0.0
    %v2547 = vmax.f32 %v2535, 0.0
    %v2548 = vmax.f32 %v2536, 0.0
    %v2549 = vmax.f32 %v2537, 0.0
    %2550 = vst [vmem:[%s8] sm:$0xff] %v2538
    %2551 = vst [vmem:[%s8 + $0x8] sm:$0xff] %v2539
    %2552 = vst [vmem:[%s8 + $0x10] sm:$0xff] %v2540
    %2553 = vst [vmem:[%s8 + $0x18] sm:$0xff] %v2541
    %2554 = vst [vmem:[%s8 + $0x20] sm:$0xff] %v2542
    %2555 = vst [vmem:[%s8 + $0x28] sm:$0xff] %v2543
    %2556 = vst [vmem:[%s8 + $0x30] sm:$0xff] %v2544
    %2557 = vst [vmem:[%s8 + $0x38] sm:$0xff] %v2545
    %2558 = vst [vmem:[%s8 + $0x40] sm:$0xf] %v2546
    %2559 = vst [vmem:[%s8 + $0x48] sm:$0xf] %v2547
    %2560 = vst [vmem:[%s8 + $0x50] sm:$0xf] %v2548
    %2561 = vst [vmem:[%s8 + $0x58] sm:$0xf] %v2549
    %v2562 = vld [vmem:[%s7] sm:$0xf]
    %v2564 = vperm.slane %v2562, 0
    %v2565 = vperm.slane %v2562, 1
    %v2566 = vperm.slane %v2562, 2
    %v2567 = vperm.slane %v2562, 3
    %v2572 = vadd.f32 %v2500, %v2564
    %v2573 = vadd.f32 %v2501, %v2565
    %v2574 = vadd.f32 %v2502, %v2566
    %v2575 = vadd.f32 %v2503, %v2567
    %v2576 = vadd.f32 %v2504, %v2564
    %v2577 = vadd.f32 %v2505, %v2565
    %v2578 = vadd.f32 %v2506, %v2566
    %v2579 = vadd.f32 %v2507, %v2567
    %v2580 = vadd.f32 %v2508, %v2564
    %v2581 = vadd.f32 %v2509, %v2565
    %v2582 = vadd.f32 %v2510, %v2566
    %v2583 = vadd.f32 %v2511, %v2567
    %v2584 = vadd.f32 %v2512, %v2564
    %v2585 = vadd.f32 %v2513, %v2565
    %v2586 = vadd.f32 %v2514, %v2566
    %v2587 = vadd.f32 %v2515, %v2567
    %v2588 = vmax.f32 %v2572, 0.0
    %v2589 = vmax.f32 %v2573, 0.0
    %v2590 = vmax.f32 %v2574, 0.0
    %v2591 = vmax.f32 %v2575, 0.0
    %v2592 = vmax.f32 %v2576, 0.0
    %v2593 = vmax.f32 %v2577, 0.0
    %v2594 = vmax.f32 %v2578, 0.0
    %v2595 = vmax.f32 %v2579, 0.0
    %v2596 = vmax.f32 %v2580, 0.0
    %v2597 = vmax.f32 %v2581, 0.0
    %v2598 = vmax.f32 %v2582, 0.0
    %v2599 = vmax.f32 %v2583, 0.0
    %v2600 = vmax.f32 %v2584, 0.0
    %v2601 = vmax.f32 %v2585, 0.0
    %v2602 = vmax.f32 %v2586, 0.0
    %v2603 = vmax.f32 %v2587, 0.0
    %v2620 = vrot.slane %v2588, 6
    %v2621 = vrot.slane %v2592, 6
    %v2622 = vsel %vm594, %v2620, %v2621
    %v2623 = vrot.slane %v2589, 6
    %v2624 = vrot.slane %v2593, 6
    %v2625 = vsel %vm594, %v2623, %v2624
    %v2626 = vrot.slane %v2590, 6
    %v2627 = vrot.slane %v2594, 6
    %v2628 = vsel %vm594, %v2626, %v2627
    %v2629 = vrot.slane %v2591, 6
    %v2630 = vrot.slane %v2595, 6
    %v2631 = vsel %vm594, %v2629, %v2630
    %v2632 = vrot.slane %v2596, 6
    %v2633 = vsel %vm594, %v2621, %v2632
    %v2634 = vrot.slane %v2597, 6
    %v2635 = vsel %vm594, %v2624, %v2634
    %v2636 = vrot.slane %v2598, 6
    %v2637 = vsel %vm594, %v2627, %v2636
    %v2638 = vrot.slane %v2599, 6
    %v2639 = vsel %vm594, %v2630, %v2638
    %v2640 = vrot.slane %v2600, 6
    %v2641 = vsel %vm594, %v2632, %v2640
    %v2642 = vrot.slane %v2601, 6
    %v2643 = vsel %vm594, %v2634, %v2642
    %v2644 = vrot.slane %v2602, 6
    %v2645 = vsel %vm594, %v2636, %v2644
    %v2646 = vrot.slane %v2603, 6
    %v2647 = vsel %vm594, %v2638, %v2646
    %s2660 = scalar_lea.vmem %s8, 96
    %2661 = vst [vmem:[%s2660] sm:$0xff] %v2622
    %2662 = vst [vmem:[%s2660 + $0x8] sm:$0xff] %v2625
    %2663 = vst [vmem:[%s2660 + $0x10] sm:$0xff] %v2628
    %2664 = vst [vmem:[%s2660 + $0x18] sm:$0xff] %v2631
    %2665 = vst [vmem:[%s2660 + $0x20] sm:$0xff] %v2633
    %2666 = vst [vmem:[%s2660 + $0x28] sm:$0xff] %v2635
    %2667 = vst [vmem:[%s2660 + $0x30] sm:$0xff] %v2637
    %2668 = vst [vmem:[%s2660 + $0x38] sm:$0xff] %v2639
    %2669 = vst [vmem:[%s2660 + $0x40] sm:$0xf] %v2641
    %2670 = vst [vmem:[%s2660 + $0x48] sm:$0xf] %v2643
    %2671 = vst [vmem:[%s2660 + $0x50] sm:$0xf] %v2645
    %2672 = vst [vmem:[%s2660 + $0x58] sm:$0xf] %v2647
    // Predicated region
    $region46: #{tpu_custom_call.1} parent=1 // pred_check
      _
    $region47: #{tpu_custom_call.1} parent=1 // pred_check_branch
      %2674 = sbr.rel (0) target = $region49
    $region48: #{tpu_custom_call.1} parent=1 // pred_region
      _
    $region49: #{tpu_custom_call.1} parent=1 // pred_fallthru
      _
    // Predicated region
    $region50: #{tpu_custom_call.1} parent=1 // pred_check
      _
    $region51: #{tpu_custom_call.1} parent=1 // pred_check_branch
      %2676 = sbr.rel (0) target = $region53
    $region52: #{tpu_custom_call.1} parent=1 // pred_region
      _
    $region53: #{tpu_custom_call.1} parent=1 // pred_fallthru
      _
    %2677 = vsyncpa [#allocation6], 1
    %2678 = vsyncpa [#allocation10], 1
    %2679 = vsyncpa [#allocation7], 1

</llo_original>
